<compile_context>
chip_gen: v6e
topology: v6e:2x2x1
jax: 0.10.0
libtpu: 0.0.40
codegen_flags: <defaults>
</compile_context>

<pallas_src>
import functools

import jax
import jax.numpy as jnp
from jax import lax
from jax.experimental import pallas as pl
from jax.experimental.pallas import tpu as pltpu


def _round_up(x, m):
    return ((x + m - 1) // m) * m


def _flash_attn_kernel(xq_ref, xkv_ref, wqkv_ref, o_ref,
                       q_scr, acc_scr, m_scr, l_scr,
                       *, d_out_pad, scale, seq_len, block_k):
    ki = pl.program_id(1)

    @pl.when(ki == 0)
    def _():
        # Q projection for this query tile (computed once per query tile),
        # with the 1/sqrt(d_k) scale folded into q.
        q = jnp.dot(xq_ref[...], wqkv_ref[:, :d_out_pad],
                    preferred_element_type=jnp.float32)
        q_scr[...] = q * scale
        m_scr[...] = jnp.full_like(m_scr, -jnp.inf)
        l_scr[...] = jnp.zeros_like(l_scr)
        acc_scr[...] = jnp.zeros_like(acc_scr)

    # Fused K|V projection for this KV tile: one wide MXU matmul, then
    # 128-aligned lane slices.
    kv = jnp.dot(xkv_ref[...], wqkv_ref[:, d_out_pad:],
                 preferred_element_type=jnp.float32)        # (tk, 2*d_out_pad)
    k = kv[:, :d_out_pad]
    v = kv[:, d_out_pad:]

    # scores = q @ k.T without materializing a transpose through the XLU.
    s = lax.dot_general(q_scr[...], k,
                        dimension_numbers=(((1,), (1,)), ((), ())),
                        preferred_element_type=jnp.float32)  # (tq, tk)

    # Mask KV columns that are sequence padding (S rounded up to a tile).
    col = ki * block_k + lax.broadcasted_iota(jnp.int32, s.shape, 1)
    s = jnp.where(col < seq_len, s, -jnp.inf)

    # Online (flash) softmax update.
    m_prev = m_scr[...]
    m_new = jnp.maximum(m_prev, jnp.max(s, axis=-1, keepdims=True))
    alpha = jnp.exp(m_prev - m_new)
    p = jnp.exp(s - m_new)
    l_scr[...] = alpha * l_scr[...] + jnp.sum(p, axis=-1, keepdims=True)

    # PV matmul: probs cast to the input dtype (bf16 MXU path when inputs are
    # bf16; identity for f32), f32 accumulation.
    cdt = xkv_ref.dtype
    acc_scr[...] = alpha * acc_scr[...] + jnp.dot(
        p.astype(cdt), v.astype(cdt), preferred_element_type=jnp.float32)
    m_scr[...] = m_new

    @pl.when(ki == pl.num_programs(1) - 1)
    def _():
        inv_l = pl.reciprocal(l_scr[...], approx=True)
        o_ref[...] = (acc_scr[...] * inv_l).astype(o_ref.dtype)


def self_attention_v2(x, w_query, w_key, w_value, *, block=128):
    """x: (S, d_in); w_*: PyTorch-style (d_out, d_in) nn.Linear weights."""
    S, d_in = x.shape
    d_out = w_query.shape[0]

    d_in_p = _round_up(d_in, 128)
    d_out_p = _round_up(d_out, 128)
    s_p = _round_up(S, block)

    # Zero-pad activations. Zero d_in columns / weight rows don't change the
    # projections; padded d_out lanes stay zero all the way through.
    x_p = jnp.zeros((s_p, d_in_p), x.dtype).at[:S, :d_in].set(x)

    # Fused, pre-transposed QKV weight: (d_in_p, 3*d_out_p), each projection in
    # its own 128-aligned lane range -> one wide MXU matmul in the kernel.
    w_qkv = jnp.zeros((d_in_p, 3 * d_out_p), x.dtype)
    w_qkv = w_qkv.at[:d_in, 0:d_out].set(w_query.T.astype(x.dtype))
    w_qkv = w_qkv.at[:d_in, d_out_p:d_out_p + d_out].set(w_key.T.astype(x.dtype))
    w_qkv = w_qkv.at[:d_in, 2 * d_out_p:2 * d_out_p + d_out].set(
        w_value.T.astype(x.dtype))

    grid = (s_p // block, s_p // block)
    scale = 1.0 / (d_out ** 0.5)   # d_k == real d_out, matching the module

    kernel = functools.partial(
        _flash_attn_kernel,
        d_out_pad=d_out_p, scale=scale, seq_len=S, block_k=block)

    out_p = pl.pallas_call(
        kernel,
        out_shape=jax.ShapeDtypeStruct((s_p, d_out_p), x.dtype),
        grid_spec=pltpu.PrefetchScalarGridSpec(
            num_scalar_prefetch=0,
            grid=grid,
            in_specs=[
                pl.BlockSpec((block, d_in_p), lambda qi, ki: (qi, 0)),       # x (query rows)
                pl.BlockSpec((block, d_in_p), lambda qi, ki: (ki, 0)),       # x (kv rows)
                pl.BlockSpec((d_in_p, 3 * d_out_p), lambda qi, ki: (0, 0)),  # fused W_qkv
            ],
            out_specs=pl.BlockSpec((block, d_out_p), lambda qi, ki: (qi, 0)),
            scratch_shapes=[
                pltpu.VMEM((block, d_out_p), jnp.float32),   # q tile (scaled)
                pltpu.VMEM((block, d_out_p), jnp.float32),   # output accumulator
                pltpu.VMEM((block, 1), jnp.float32),         # running max
                pltpu.VMEM((block, 1), jnp.float32),         # running sum
            ],
        ),
        compiler_params=pltpu.CompilerParams(
            dimension_semantics=("parallel", "arbitrary"),
            vmem_limit_bytes=32 * 1024 * 1024,
        ),
    )(x_p, x_p, w_qkv)

    return out_p[:S, :d_out]


def self_attention_v2_ref(x, w_query, w_key, w_value):
    """Pure-JAX reference mirroring the PyTorch forward."""
    q = x @ w_query.T
    k = x @ w_key.T
    v = x @ w_value.T
    scores = q @ k.T
    d_k = k.shape[-1]
    attn = jax.nn.softmax(scores / d_k ** 0.5, axis=-1)
    return attn @ v


if __name__ == "__main__":
    # Case 1: the exact driver from the PyTorch spec (6 tokens, d_in=3, d_out=2).
    inputs = jnp.array(
        [[0.43, 0.15, 0.89],
         [0.55, 0.87, 0.66],
         [0.57, 0.85, 0.64],
         [0.22, 0.58, 0.33],
         [0.77, 0.25, 0.10],
         [0.05, 0.80, 0.55]], dtype=jnp.float32)

    d_in = inputs.shape[1]
    d_out = 2

    key = jax.random.PRNGKey(0)
    kq, kk, kv, kx2, kw2 = jax.random.split(key, 5)
    bound = 1.0 / (d_in ** 0.5)
    w_query = jax.random.uniform(kq, (d_out, d_in), jnp.float32, -bound, bound)
    w_key = jax.random.uniform(kk, (d_out, d_in), jnp.float32, -bound, bound)
    w_value = jax.random.uniform(kv, (d_out, d_in), jnp.float32, -bound, bound)

    out = jax.block_until_ready(
        self_attention_v2(inputs, w_query, w_key, w_value))
    ref = self_attention_v2_ref(inputs, w_query, w_key, w_value)
    assert jnp.allclose(out, ref, atol=1e-2, rtol=1e-2), (out, ref)

    # Case 2: exercises multiple grid tiles and the KV-padding mask
    # (S=300 -> padded to 384, grid (3, 3)).
    S2, din2, dout2 = 300, 48, 32
    x2 = jax.random.normal(kx2, (S2, din2), jnp.float32)
    kw_q, kw_k, kw_v = jax.random.split(kw2, 3)
    b2 = 1.0 / (din2 ** 0.5)
    wq2 = jax.random.uniform(kw_q, (dout2, din2), jnp.float32, -b2, b2)
    wk2 = jax.random.uniform(kw_k, (dout2, din2), jnp.float32, -b2, b2)
    wv2 = jax.random.uniform(kw_v, (dout2, din2), jnp.float32, -b2, b2)

    out2 = jax.block_until_ready(self_attention_v2(x2, wq2, wk2, wv2))
    ref2 = self_attention_v2_ref(x2, wq2, wk2, wv2)
    assert jnp.allclose(out2, ref2, atol=1e-2, rtol=1e-2), \
        float(jnp.max(jnp.abs(out2 - ref2)))

    print("KERNEL_OK")
</pallas_src>

<mosaic_0001>
module attributes {stable_mosaic.version = 11 : i64} {
  func.func @_flash_attn_kernel(%arg0: i32, %arg1: i32, %arg2: memref<128x128xf32, #tpu.memory_space<vmem>>, %arg3: memref<128x128xf32, #tpu.memory_space<vmem>>, %arg4: memref<128x384xf32, #tpu.memory_space<vmem>>, %arg5: memref<128x128xf32, #tpu.memory_space<vmem>>, %arg6: memref<128x128xf32, #tpu.memory_space<vmem>>, %arg7: memref<128x128xf32, #tpu.memory_space<vmem>>, %arg8: memref<128x1xf32, #tpu.memory_space<vmem>>, %arg9: memref<128x1xf32, #tpu.memory_space<vmem>>) attributes {dimension_semantics = [#tpu.dimension_semantics<parallel>, #tpu.dimension_semantics<arbitrary>], iteration_bounds = array<i64: 1, 1>, scalar_prefetch = 0 : i64, scratch_operands = 4 : i64, tpu.core_type = #tpu.core_type<tc>, window_params = [{transform_indices = @transform_0, window_bounds = array<i64: 128, 128>}, {transform_indices = @transform_1, window_bounds = array<i64: 128, 128>}, {pipeline_mode = #tpu.pipeline_mode<synchronous>, transform_indices = @transform_2, window_bounds = array<i64: 128, 384>}, {transform_indices = @transform_3, window_bounds = array<i64: 128, 128>}]} {
    %c0_i32 = arith.constant 0 : i32
    %0 = arith.cmpi eq, %arg1, %c0_i32 : i32
    %1 = arith.extui %0 : i1 to i32
    %c0_i32_0 = arith.constant 0 : i32
    %2 = arith.cmpi ne, %1, %c0_i32_0 : i32
    scf.if %2 {
      %c0_24 = arith.constant 0 : index
      %c0_25 = arith.constant 0 : index
      %43 = vector.load %arg2[%c0_24, %c0_25] : memref<128x128xf32, #tpu.memory_space<vmem>>, vector<128x128xf32>
      %c0_26 = arith.constant 0 : index
      %c0_27 = arith.constant 0 : index
      %44 = vector.load %arg4[%c0_26, %c0_27] : memref<128x384xf32, #tpu.memory_space<vmem>>, vector<128x128xf32>
      %cst_28 = arith.constant dense<0.000000e+00> : vector<128x128xf32>
      %45 = tpu.matmul %43, %44, %cst_28 {dimension_numbers = #tpu.dot_dimension_numbers<[1], [0], [0], [1], [0, 0, 1, 1], [], []>} : vector<128x128xf32>, vector<128x128xf32>, vector<128x128xf32> -> vector<128x128xf32>
      %cst_29 = arith.constant 0.707106769 : f32
      %46 = vector.broadcast %cst_29 : f32 to vector<128x128xf32>
      %47 = arith.mulf %45, %46 : vector<128x128xf32>
      %c0_30 = arith.constant 0 : index
      %c0_31 = arith.constant 0 : index
      %48 = vector.load %arg6[%c0_30, %c0_31] : memref<128x128xf32, #tpu.memory_space<vmem>>, vector<128x128xf32>
      tpu.vector_store %arg6[%c0_30, %c0_31], %47 {strides = array<i32>} : memref<128x128xf32, #tpu.memory_space<vmem>>, vector<128x128xf32>,
      %cst_32 = arith.constant 0xFF800000 : f32
      %49 = vector.broadcast %cst_32 : f32 to vector<128x1xf32>
      %c0_33 = arith.constant 0 : index
      %c0_34 = arith.constant 0 : index
      %50 = vector.load %arg8[%c0_33, %c0_34] : memref<128x1xf32, #tpu.memory_space<vmem>>, vector<128x1xf32>
      tpu.vector_store %arg8[%c0_33, %c0_34], %49 {strides = array<i32>} : memref<128x1xf32, #tpu.memory_space<vmem>>, vector<128x1xf32>,
      %cst_35 = arith.constant 0.000000e+00 : f32
      %51 = vector.broadcast %cst_35 : f32 to vector<128x1xf32>
      %c0_36 = arith.constant 0 : index
      %c0_37 = arith.constant 0 : index
      %52 = vector.load %arg9[%c0_36, %c0_37] : memref<128x1xf32, #tpu.memory_space<vmem>>, vector<128x1xf32>
      tpu.vector_store %arg9[%c0_36, %c0_37], %51 {strides = array<i32>} : memref<128x1xf32, #tpu.memory_space<vmem>>, vector<128x1xf32>,
      %cst_38 = arith.constant 0.000000e+00 : f32
      %53 = vector.broadcast %cst_38 : f32 to vector<128x128xf32>
      %c0_39 = arith.constant 0 : index
      %c0_40 = arith.constant 0 : index
      %54 = vector.load %arg7[%c0_39, %c0_40] : memref<128x128xf32, #tpu.memory_space<vmem>>, vector<128x128xf32>
      tpu.vector_store %arg7[%c0_39, %c0_40], %53 {strides = array<i32>} : memref<128x128xf32, #tpu.memory_space<vmem>>, vector<128x128xf32>,
    } else {
    }
    %c0 = arith.constant 0 : index
    %c0_1 = arith.constant 0 : index
    %3 = vector.load %arg3[%c0, %c0_1] : memref<128x128xf32, #tpu.memory_space<vmem>>, vector<128x128xf32>
    %c0_2 = arith.constant 0 : index
    %c128 = arith.constant 128 : index
    %4 = vector.load %arg4[%c0_2, %c128] : memref<128x384xf32, #tpu.memory_space<vmem>>, vector<128x256xf32>
    %cst = arith.constant dense<0.000000e+00> : vector<128x256xf32>
    %5 = tpu.matmul %3, %4, %cst {dimension_numbers = #tpu.dot_dimension_numbers<[1], [0], [0], [1], [0, 0, 1, 1], [], []>} : vector<128x128xf32>, vector<128x256xf32>, vector<128x256xf32> -> vector<128x256xf32>
    %6 = vector.extract_strided_slice %5 {offsets = [0, 0], sizes = [128, 128], strides = [1, 1]} : vector<128x256xf32> to vector<128x128xf32>
    %7 = vector.extract_strided_slice %5 {offsets = [0, 128], sizes = [128, 128], strides = [1, 1]} : vector<128x256xf32> to vector<128x128xf32>
    %c0_3 = arith.constant 0 : index
    %c0_4 = arith.constant 0 : index
    %8 = vector.load %arg6[%c0_3, %c0_4] : memref<128x128xf32, #tpu.memory_space<vmem>>, vector<128x128xf32>
    %cst_5 = arith.constant dense<0.000000e+00> : vector<128x128xf32>
    %9 = tpu.matmul %8, %6, %cst_5 {dimension_numbers = #tpu.dot_dimension_numbers<[1], [1], [0], [0], [0, 0, 1, 0], [], []>} : vector<128x128xf32>, vector<128x128xf32>, vector<128x128xf32> -> vector<128x128xf32>
    %c128_i32 = arith.constant 128 : i32
    %10 = arith.muli %arg1, %c128_i32 : i32
    %11 = tpu.iota {dimensions = array<i32: 1>} : vector<128x128xi32>
    %12 = vector.broadcast %10 : i32 to vector<128x128xi32>
    %13 = arith.addi %12, %11 : vector<128x128xi32>
    %c6_i32 = arith.constant 6 : i32
    %14 = vector.broadcast %c6_i32 : i32 to vector<128x128xi32>
    %15 = arith.cmpi slt, %13, %14 : vector<128x128xi32>
    %cst_6 = arith.constant 0xFF800000 : f32
    %16 = vector.broadcast %cst_6 : f32 to vector<128x128xf32>
    %17 = arith.select %15, %9, %16 : vector<128x128xi1>, vector<128x128xf32>
    %c0_7 = arith.constant 0 : index
    %c0_8 = arith.constant 0 : index
    %18 = vector.load %arg8[%c0_7, %c0_8] : memref<128x1xf32, #tpu.memory_space<vmem>>, vector<128x1xf32>
    %cst_9 = arith.constant dense<0xFF800000> : vector<128xf32>
    %19 = vector.multi_reduction <maximumf>, %17, %cst_9 [1] : vector<128x128xf32> to vector<128xf32>
    %20 = vector.shape_cast %19 : vector<128xf32> to vector<128x1xf32>
    %21 = arith.maximumf %18, %20 : vector<128x1xf32>
    %22 = arith.subf %18, %21 : vector<128x1xf32>
    %23 = math.exp %22 : vector<128x1xf32>
    %24 = vector.broadcast %21 : vector<128x1xf32> to vector<128x128xf32>
    %25 = arith.subf %17, %24 : vector<128x128xf32>
    %26 = math.exp %25 : vector<128x128xf32>
    %c0_10 = arith.constant 0 : index
    %c0_11 = arith.constant 0 : index
    %27 = vector.load %arg9[%c0_10, %c0_11] : memref<128x1xf32, #tpu.memory_space<vmem>>, vector<128x1xf32>
    %28 = arith.mulf %23, %27 : vector<128x1xf32>
    %cst_12 = arith.constant dense<0.000000e+00> : vector<128xf32>
    %29 = vector.multi_reduction <add>, %26, %cst_12 [1] : vector<128x128xf32> to vector<128xf32>
    %30 = vector.shape_cast %29 : vector<128xf32> to vector<128x1xf32>
    %31 = arith.addf %28, %30 : vector<128x1xf32>
    %c0_13 = arith.constant 0 : index
    %c0_14 = arith.constant 0 : index
    %32 = vector.load %arg9[%c0_13, %c0_14] : memref<128x1xf32, #tpu.memory_space<vmem>>, vector<128x1xf32>
    tpu.vector_store %arg9[%c0_13, %c0_14], %31 {strides = array<i32>} : memref<128x1xf32, #tpu.memory_space<vmem>>, vector<128x1xf32>,
    %c0_15 = arith.constant 0 : index
    %c0_16 = arith.constant 0 : index
    %33 = vector.load %arg7[%c0_15, %c0_16] : memref<128x128xf32, #tpu.memory_space<vmem>>, vector<128x128xf32>
    %34 = vector.broadcast %23 : vector<128x1xf32> to vector<128x128xf32>
    %35 = arith.mulf %34, %33 : vector<128x128xf32>
    %cst_17 = arith.constant dense<0.000000e+00> : vector<128x128xf32>
    %36 = tpu.matmul %26, %7, %cst_17 {dimension_numbers = #tpu.dot_dimension_numbers<[1], [0], [0], [1], [0, 0, 1, 1], [], []>} : vector<128x128xf32>, vector<128x128xf32>, vector<128x128xf32> -> vector<128x128xf32>
    %37 = arith.addf %35, %36 : vector<128x128xf32>
    %c0_18 = arith.constant 0 : index
    %c0_19 = arith.constant 0 : index
    %38 = vector.load %arg7[%c0_18, %c0_19] : memref<128x128xf32, #tpu.memory_space<vmem>>, vector<128x128xf32>
    tpu.vector_store %arg7[%c0_18, %c0_19], %37 {strides = array<i32>} : memref<128x128xf32, #tpu.memory_space<vmem>>, vector<128x128xf32>,
    %c0_20 = arith.constant 0 : index
    %c0_21 = arith.constant 0 : index
    %39 = vector.load %arg8[%c0_20, %c0_21] : memref<128x1xf32, #tpu.memory_space<vmem>>, vector<128x1xf32>
    tpu.vector_store %arg8[%c0_20, %c0_21], %21 {strides = array<i32>} : memref<128x1xf32, #tpu.memory_space<vmem>>, vector<128x1xf32>,
    %c0_i32_22 = arith.constant 0 : i32
    %40 = arith.cmpi eq, %arg1, %c0_i32_22 : i32
    %41 = arith.extui %40 : i1 to i32
    %c0_i32_23 = arith.constant 0 : i32
    %42 = arith.cmpi ne, %41, %c0_i32_23 : i32
    scf.if %42 {
      %c0_24 = arith.constant 0 : index
      %c0_25 = arith.constant 0 : index
      %43 = vector.load %arg9[%c0_24, %c0_25] : memref<128x1xf32, #tpu.memory_space<vmem>>, vector<128x1xf32>
      %44 = tpu.reciprocal %43 {approx = true} : vector<128x1xf32> -> vector<128x1xf32>
      %c0_26 = arith.constant 0 : index
      %c0_27 = arith.constant 0 : index
      %45 = vector.load %arg7[%c0_26, %c0_27] : memref<128x128xf32, #tpu.memory_space<vmem>>, vector<128x128xf32>
      %46 = vector.broadcast %44 : vector<128x1xf32> to vector<128x128xf32>
      %47 = arith.mulf %45, %46 : vector<128x128xf32>
      %c0_28 = arith.constant 0 : index
      %c0_29 = arith.constant 0 : index
      %48 = vector.load %arg5[%c0_28, %c0_29] : memref<128x128xf32, #tpu.memory_space<vmem>>, vector<128x128xf32>
      tpu.vector_store %arg5[%c0_28, %c0_29], %47 {strides = array<i32>} : memref<128x128xf32, #tpu.memory_space<vmem>>, vector<128x128xf32>,
    } else {
    }
    return
  }
  func.func @transform_0(%arg0: i32, %arg1: i32) -> (i32, i32) {
    %c0_i32 = arith.constant 0 : i32
    %c0_i32_0 = arith.constant 0 : i32
    return %arg0, %c0_i32 : i32, i32
  }
  func.func @transform_1(%arg0: i32, %arg1: i32) -> (i32, i32) {
    %c0_i32 = arith.constant 0 : i32
    %c0_i32_0 = arith.constant 0 : i32
    return %arg1, %c0_i32 : i32, i32
  }
  func.func @transform_2(%arg0: i32, %arg1: i32) -> (i32, i32) {
    %c0_i32 = arith.constant 0 : i32
    %c0_i32_0 = arith.constant 0 : i32
    %c0_i32_1 = arith.constant 0 : i32
    return %c0_i32, %c0_i32_0 : i32, i32
  }
  func.func @transform_3(%arg0: i32, %arg1: i32) -> (i32, i32) {
    %c0_i32 = arith.constant 0 : i32
    %c0_i32_0 = arith.constant 0 : i32
    return %arg0, %c0_i32 : i32, i32
  }
}

</mosaic_0001>

<llo_original>
// kernel: tpu_custom_call.1
$region0: #{tpu_custom_call.1}
  #allocation0 [shape = 'u32[]', space=smem, size = 0x4, offset = 0x4, fixed_abs, tag = 'smem constant byte address 0x4 - core index']
  #allocation1 [shape = 'u32[144,128]{1,0:T(1,128)}', space=vmem, size = 0x12000, scoped, tag = 'internal scratch']
  #allocation2 [shape = 'f32[128,128]{1,0:T(8,128)}', space=vmem, size = 0x10000, scoped, tag = 'scratch operand']
  #allocation3 [shape = 'f32[128,128]{1,0:T(8,128)}', space=vmem, size = 0x10000, scoped, tag = 'scratch operand']
  #allocation4 [shape = 'f32[128,1]{1,0:T(8,128)}', space=vmem, size = 0x10000, scoped, tag = 'scratch operand']
  #allocation5 [shape = 'f32[128,1]{1,0:T(8,128)}', space=vmem, size = 0x10000, scoped, tag = 'scratch operand']
  %s0 = inlined_call_operand.hbm [shape: f32[128,128], index: 0, kind: input, shape index: {}]
  %s1 = inlined_call_operand.hbm [shape: f32[128,128], index: 1, kind: input, shape index: {}]
  %s2 = inlined_call_operand.hbm [shape: f32[128,384], index: 2, kind: input, shape index: {}]
  %s3 = inlined_call_operand.hbm [shape: f32[128,128], index: 3, kind: output, shape index: {}]
  %s4 = sld [smem:[#allocation0]]
  $region42: #{tpu_custom_call.1} parent=0
    _
  %s6 = ssub.s32 1, %s4
  %s7 = scalar_select 0, %s6, %s4
  $region1: #{tpu_custom_call.1} parent=0
    #allocation6 [shape = 'u8[65536]{0}', space=vmem, size = 0x10000, scoped, tag = 'input window, operand 0, single buffered']
    #allocation7 [shape = 's32[1]{0}', space=sflag, size = 0x4, scoped, tag = 'scoped memory for tpu_custom_call.1']
    #allocation8 [shape = 's32[1]{0}', space=sflag, size = 0x4, scoped, tag = 'scoped memory for tpu_custom_call.1']
    #allocation9 [shape = 'u8[65536]{0}', space=vmem, size = 0x10000, scoped, tag = 'input window, operand 1, single buffered']
    #allocation10 [shape = 's32[1]{0}', space=sflag, size = 0x4, scoped, tag = 'scoped memory for tpu_custom_call.1']
    #allocation11 [shape = 'u8[196608]{0}', space=vmem, size = 0x30000, scoped, tag = 'input window, operand 2, single buffered']
    #allocation12 [shape = 'u8[65536]{0}', space=vmem, size = 0x10000, scoped, tag = 'output window, operand 0, single buffered']
    %8 = vsyncpa [#allocation7], 0
    %9 = vsyncpa [#allocation10], 0
    %10 = vsyncpa [#allocation8], 0
    // Predicated region
    $region2: #{tpu_custom_call.1} parent=1 // pred_check
      _
    $region3: #{tpu_custom_call.1} parent=1 // pred_check_branch
      %12 = sbr.rel (0) target = $region5
    $region4: #{tpu_custom_call.1} parent=1 // pred_region
      %s14 = ssub.s32 2048, 2048
      %15 = vsyncadd [#allocation7], %s14
      %s16 = sshll.u32 [#allocation6], 4
      %s17 = int_to_ptr.vmem [resolvable:$true] %s16
      %22 = dma.hbm_to_vmem [thread:$0]  %s0, 2048, %s17, [#allocation7], 128, 128, 8
    $region5: #{tpu_custom_call.1} parent=1 // pred_fallthru
      _
    // Predicated region
    $region6: #{tpu_custom_call.1} parent=1 // pred_check
      _
    $region7: #{tpu_custom_call.1} parent=1 // pred_check_branch
      %24 = sbr.rel (0) target = $region9
    $region8: #{tpu_custom_call.1} parent=1 // pred_region
      %s26 = ssub.s32 2048, 2048
      %27 = vsyncadd [#allocation10], %s26
      %s28 = sshll.u32 [#allocation9], 4
      %s29 = int_to_ptr.vmem [resolvable:$true] %s28
      %34 = dma.hbm_to_vmem [thread:$0]  %s1, 2048, %s29, [#allocation10], 128, 128, 8
    $region9: #{tpu_custom_call.1} parent=1 // pred_fallthru
      _
    // Predicated region
    $region10: #{tpu_custom_call.1} parent=1 // pred_check
      _
    $region11: #{tpu_custom_call.1} parent=1 // pred_check_branch
      %36 = sbr.rel (0) target = $region13
    $region12: #{tpu_custom_call.1} parent=1 // pred_region
      %s38 = ssub.s32 6144, 6144
      %39 = vsyncadd [#allocation10], %s38
      %s40 = sshll.u32 [#allocation11], 4
      %s41 = int_to_ptr.vmem [resolvable:$true] %s40
      %46 = dma.hbm_to_vmem [thread:$0]  %s2, 6144, %s41, [#allocation10], 384, 384, 24
    $region13: #{tpu_custom_call.1} parent=1 // pred_fallthru
      _
    // Predicated region
    $region14: #{tpu_custom_call.1} parent=1 // pred_check
      _
    $region15: #{tpu_custom_call.1} parent=1 // pred_check_branch
      %48 = sbr.rel (0) target = $region17
    $region16: #{tpu_custom_call.1} parent=1 // pred_region
      %49 = dma.done [#allocation7], 2048
    $region17: #{tpu_custom_call.1} parent=1 // pred_fallthru
      _
    // Predicated region
    $region18: #{tpu_custom_call.1} parent=1 // pred_check
      _
    $region19: #{tpu_custom_call.1} parent=1 // pred_check_branch
      %51 = sbr.rel (0) target = $region21
    $region20: #{tpu_custom_call.1} parent=1 // pred_region
      %52 = dma.done [#allocation10], 2048
    $region21: #{tpu_custom_call.1} parent=1 // pred_fallthru
      _
    // Predicated region
    $region22: #{tpu_custom_call.1} parent=1 // pred_check
      _
    $region23: #{tpu_custom_call.1} parent=1 // pred_check_branch
      %54 = sbr.rel (0) target = $region25
    $region24: #{tpu_custom_call.1} parent=1 // pred_region
      %55 = dma.done [#allocation10], 6144
    $region25: #{tpu_custom_call.1} parent=1 // pred_fallthru
      _
    %p56 = scmp.eq.s32.totalorder 0, 0
    // Predicated region
    $region26: #{tpu_custom_call.1} parent=1 // pred_check
      %p57 = pneg %p56
    $region27: #{tpu_custom_call.1} parent=1 // pred_check_branch
      %59 = sbr.rel (%p57) target = $region29
    $region28: #{tpu_custom_call.1} parent=1 // pred_region
      %v60 = vld [vmem:[#allocation6] sm:$0xff]
      %v61 = vld [vmem:[#allocation6 + $0x8] sm:$0xff]
      %v62 = vld [vmem:[#allocation6 + $0x10] sm:$0xff]
      %v63 = vld [vmem:[#allocation6 + $0x18] sm:$0xff]
      %v64 = vld [vmem:[#allocation6 + $0x20] sm:$0xff]
      %v65 = vld [vmem:[#allocation6 + $0x28] sm:$0xff]
      %v66 = vld [vmem:[#allocation6 + $0x30] sm:$0xff]
      %v67 = vld [vmem:[#allocation6 + $0x38] sm:$0xff]
      %v68 = vld [vmem:[#allocation6 + $0x40] sm:$0xff]
      %v69 = vld [vmem:[#allocation6 + $0x48] sm:$0xff]
      %v70 = vld [vmem:[#allocation6 + $0x50] sm:$0xff]
      %v71 = vld [vmem:[#allocation6 + $0x58] sm:$0xff]
      %v72 = vld [vmem:[#allocation6 + $0x60] sm:$0xff]
      %v73 = vld [vmem:[#allocation6 + $0x68] sm:$0xff]
      %v74 = vld [vmem:[#allocation6 + $0x70] sm:$0xff]
      %v75 = vld [vmem:[#allocation6 + $0x78] sm:$0xff]
      %v76 = vld [vmem:[#allocation11] sm:$0xff]
      %v77 = vld [vmem:[#allocation11 + $0x18] sm:$0xff]
      %v78 = vld [vmem:[#allocation11 + $0x30] sm:$0xff]
      %v79 = vld [vmem:[#allocation11 + $0x48] sm:$0xff]
      %v80 = vld [vmem:[#allocation11 + $0x60] sm:$0xff]
      %v81 = vld [vmem:[#allocation11 + $0x78] sm:$0xff]
      %v82 = vld [vmem:[#allocation11 + $0x90] sm:$0xff]
      %v83 = vld [vmem:[#allocation11 + $0xa8] sm:$0xff]
      %v84 = vld [vmem:[#allocation11 + $0xc0] sm:$0xff]
      %v85 = vld [vmem:[#allocation11 + $0xd8] sm:$0xff]
      %v86 = vld [vmem:[#allocation11 + $0xf0] sm:$0xff]
      %v87 = vld [vmem:[#allocation11 + $0x108] sm:$0xff]
      %v88 = vld [vmem:[#allocation11 + $0x120] sm:$0xff]
      %v89 = vld [vmem:[#allocation11 + $0x138] sm:$0xff]
      %v90 = vld [vmem:[#allocation11 + $0x150] sm:$0xff]
      %v91 = vld [vmem:[#allocation11 + $0x168] sm:$0xff]
      %92 = vmatprep.subr.mxu0 0.0
      %93 = vmatpush1.msra.mxu0 %v91
      %94 = vmatprep.subr.mxu0 0.0
      %95 = vmatpush1.msra.mxu0 %v90
      %96 = vmatprep.subr.mxu0 0.0
      %97 = vmatpush1.msra.mxu0 %v89
      %98 = vmatprep.subr.mxu0 0.0
      %99 = vmatpush1.msra.mxu0 %v88
      %100 = vmatprep.subr.mxu0 0.0
      %101 = vmatpush1.msra.mxu0 %v87
      %102 = vmatprep.subr.mxu0 0.0
      %103 = vmatpush1.msra.mxu0 %v86
      %104 = vmatprep.subr.mxu0 0.0
      %105 = vmatpush1.msra.mxu0 %v85
      %106 = vmatprep.subr.mxu0 0.0
      %107 = vmatpush1.msra.mxu0 %v84
      %108 = vmatprep.subr.mxu0 0.0
      %109 = vmatpush1.msra.mxu0 %v83
      %110 = vmatprep.subr.mxu0 0.0
      %111 = vmatpush1.msra.mxu0 %v82
      %112 = vmatprep.subr.mxu0 0.0
      %113 = vmatpush1.msra.mxu0 %v81
      %114 = vmatprep.subr.mxu0 0.0
      %115 = vmatpush1.msra.mxu0 %v80
      %116 = vmatprep.subr.mxu0 0.0
      %117 = vmatpush1.msra.mxu0 %v79
      %118 = vmatprep.subr.mxu0 0.0
      %119 = vmatpush1.msra.mxu0 %v78
      %120 = vmatprep.subr.mxu0 0.0
      %121 = vmatpush1.msra.mxu0 %v77
      %122 = vmatprep.subr.mxu0 0.0
      %123 = vmatpush1.msra.mxu0 %v76
      %124 = vmatprep.subr.mxu0 0.0
      %125 = vmatpush2.msra.mxu0 0.0
      %126 = vmatprep.subr.mxu0 0.0
      %127 = vmatpush2.msra.mxu0 0.0
      %128 = vmatprep.subr.mxu0 0.0
      %129 = vmatpush2.msra.mxu0 0.0
      %130 = vmatprep.subr.mxu0 0.0
      %131 = vmatpush2.msra.mxu0 0.0
      %132 = vmatprep.subr.mxu0 0.0
      %133 = vmatpush2.msra.mxu0 0.0
      %134 = vmatprep.subr.mxu0 0.0
      %135 = vmatpush2.msra.mxu0 0.0
      %136 = vmatprep.subr.mxu0 0.0
      %137 = vmatpush2.msra.mxu0 0.0
      %138 = vmatprep.subr.mxu0 0.0
      %139 = vmatpush2.msra.mxu0 0.0
      %140 = vmatprep.subr.mxu0 0.0
      %141 = vmatpush2.msra.mxu0 0.0
      %142 = vmatprep.subr.mxu0 0.0
      %143 = vmatpush2.msra.mxu0 0.0
      %144 = vmatprep.subr.mxu0 0.0
      %145 = vmatpush2.msra.mxu0 0.0
      %146 = vmatprep.subr.mxu0 0.0
      %147 = vmatpush2.msra.mxu0 0.0
      %148 = vmatprep.subr.mxu0 0.0
      %149 = vmatpush2.msra.mxu0 0.0
      %150 = vmatprep.subr.mxu0 0.0
      %151 = vmatpush2.msra.mxu0 0.0
      %152 = vmatprep.subr.mxu0 0.0
      %153 = vmatpush2.msra.mxu0 0.0
      %154 = vmatprep.subr.mxu0 0.0
      %155 = vmatpush2.msra.mxu0 0.0
      %156 = vmatprep.mubr.f32.mxu0 0.0
      %157 = vmatmul.mubr.f32.gmra.mxu0 %v60
      %v158 = vpop.f32.mrf.mxu0
      %v159 = vadd.f32 0.0, %v158
      %v160 = vpop.f32.mrf.mxu0
      %161 = vmatprep.mubr.f32.mxu0 0.0
      %162 = vmatmul.mubr.f32.gmra.mxu0 %v61
      %v163 = vpop.f32.mrf.mxu0
      %v164 = vadd.f32 0.0, %v163
      %v165 = vpop.f32.mrf.mxu0
      %166 = vmatprep.mubr.f32.mxu0 0.0
      %167 = vmatmul.mubr.f32.gmra.mxu0 %v62
      %v168 = vpop.f32.mrf.mxu0
      %v169 = vadd.f32 0.0, %v168
      %v170 = vpop.f32.mrf.mxu0
      %171 = vmatprep.mubr.f32.mxu0 0.0
      %172 = vmatmul.mubr.f32.gmra.mxu0 %v63
      %v173 = vpop.f32.mrf.mxu0
      %v174 = vadd.f32 0.0, %v173
      %v175 = vpop.f32.mrf.mxu0
      %176 = vmatprep.mubr.f32.mxu0 0.0
      %177 = vmatmul.mubr.f32.gmra.mxu0 %v64
      %v178 = vpop.f32.mrf.mxu0
      %v179 = vadd.f32 0.0, %v178
      %v180 = vpop.f32.mrf.mxu0
      %181 = vmatprep.mubr.f32.mxu0 0.0
      %182 = vmatmul.mubr.f32.gmra.mxu0 %v65
      %v183 = vpop.f32.mrf.mxu0
      %v184 = vadd.f32 0.0, %v183
      %v185 = vpop.f32.mrf.mxu0
      %186 = vmatprep.mubr.f32.mxu0 0.0
      %187 = vmatmul.mubr.f32.gmra.mxu0 %v66
      %v188 = vpop.f32.mrf.mxu0
      %v189 = vadd.f32 0.0, %v188
      %v190 = vpop.f32.mrf.mxu0
      %191 = vmatprep.mubr.f32.mxu0 0.0
      %192 = vmatmul.mubr.f32.gmra.mxu0 %v67
      %v193 = vpop.f32.mrf.mxu0
      %v194 = vadd.f32 0.0, %v193
      %v195 = vpop.f32.mrf.mxu0
      %196 = vmatprep.mubr.f32.mxu0 0.0
      %197 = vmatmul.mubr.f32.gmra.mxu0 %v68
      %v198 = vpop.f32.mrf.mxu0
      %v199 = vadd.f32 0.0, %v198
      %v200 = vpop.f32.mrf.mxu0
      %201 = vmatprep.mubr.f32.mxu0 0.0
      %202 = vmatmul.mubr.f32.gmra.mxu0 %v69
      %v203 = vpop.f32.mrf.mxu0
      %v204 = vadd.f32 0.0, %v203
      %v205 = vpop.f32.mrf.mxu0
      %206 = vmatprep.mubr.f32.mxu0 0.0
      %207 = vmatmul.mubr.f32.gmra.mxu0 %v70
      %v208 = vpop.f32.mrf.mxu0
      %v209 = vadd.f32 0.0, %v208
      %v210 = vpop.f32.mrf.mxu0
      %211 = vmatprep.mubr.f32.mxu0 0.0
      %212 = vmatmul.mubr.f32.gmra.mxu0 %v71
      %v213 = vpop.f32.mrf.mxu0
      %v214 = vadd.f32 0.0, %v213
      %v215 = vpop.f32.mrf.mxu0
      %216 = vmatprep.mubr.f32.mxu0 0.0
      %217 = vmatmul.mubr.f32.gmra.mxu0 %v72
      %v218 = vpop.f32.mrf.mxu0
      %v219 = vadd.f32 0.0, %v218
      %v220 = vpop.f32.mrf.mxu0
      %221 = vmatprep.mubr.f32.mxu0 0.0
      %222 = vmatmul.mubr.f32.gmra.mxu0 %v73
      %v223 = vpop.f32.mrf.mxu0
      %v224 = vadd.f32 0.0, %v223
      %v225 = vpop.f32.mrf.mxu0
      %226 = vmatprep.mubr.f32.mxu0 0.0
      %227 = vmatmul.mubr.f32.gmra.mxu0 %v74
      %v228 = vpop.f32.mrf.mxu0
      %v229 = vadd.f32 0.0, %v228
      %v230 = vpop.f32.mrf.mxu0
      %231 = vmatprep.mubr.f32.mxu0 0.0
      %232 = vmatmul.mubr.f32.gmra.mxu0 %v75
      %v233 = vpop.f32.mrf.mxu0
      %v234 = vadd.f32 0.0, %v233
      %v235 = vpop.f32.mrf.mxu0
      %236 = vdwg.mxu0
      %v237 = vmul.f32 %v159, 0.70710677
      %v238 = vmul.f32 %v164, 0.70710677
      %v239 = vmul.f32 %v169, 0.70710677
      %v240 = vmul.f32 %v174, 0.70710677
      %v241 = vmul.f32 %v179, 0.70710677
      %v242 = vmul.f32 %v184, 0.70710677
      %v243 = vmul.f32 %v189, 0.70710677
      %v244 = vmul.f32 %v194, 0.70710677
      %v245 = vmul.f32 %v199, 0.70710677
      %v246 = vmul.f32 %v204, 0.70710677
      %v247 = vmul.f32 %v209, 0.70710677
      %v248 = vmul.f32 %v214, 0.70710677
      %v249 = vmul.f32 %v219, 0.70710677
      %v250 = vmul.f32 %v224, 0.70710677
      %v251 = vmul.f32 %v229, 0.70710677
      %v252 = vmul.f32 %v234, 0.70710677
      %253 = vst [vmem:[#allocation2] sm:$0xff] %v237
      %254 = vst [vmem:[#allocation2 + $0x8] sm:$0xff] %v238
      %255 = vst [vmem:[#allocation2 + $0x10] sm:$0xff] %v239
      %256 = vst [vmem:[#allocation2 + $0x18] sm:$0xff] %v240
      %257 = vst [vmem:[#allocation2 + $0x20] sm:$0xff] %v241
      %258 = vst [vmem:[#allocation2 + $0x28] sm:$0xff] %v242
      %259 = vst [vmem:[#allocation2 + $0x30] sm:$0xff] %v243
      %260 = vst [vmem:[#allocation2 + $0x38] sm:$0xff] %v244
      %261 = vst [vmem:[#allocation2 + $0x40] sm:$0xff] %v245
      %262 = vst [vmem:[#allocation2 + $0x48] sm:$0xff] %v246
      %263 = vst [vmem:[#allocation2 + $0x50] sm:$0xff] %v247
      %264 = vst [vmem:[#allocation2 + $0x58] sm:$0xff] %v248
      %265 = vst [vmem:[#allocation2 + $0x60] sm:$0xff] %v249
      %266 = vst [vmem:[#allocation2 + $0x68] sm:$0xff] %v250
      %267 = vst [vmem:[#allocation2 + $0x70] sm:$0xff] %v251
      %268 = vst [vmem:[#allocation2 + $0x78] sm:$0xff] %v252
      %vm269 = vcmask 7168
      %270 = vst.msk [vmem:[#allocation4] sm:$0xff] %vm269, -inf
      %271 = vst.msk [vmem:[#allocation4 + $0x8] sm:$0xff] %vm269, -inf
      %272 = vst.msk [vmem:[#allocation4 + $0x10] sm:$0xff] %vm269, -inf
      %273 = vst.msk [vmem:[#allocation4 + $0x18] sm:$0xff] %vm269, -inf
      %274 = vst.msk [vmem:[#allocation4 + $0x20] sm:$0xff] %vm269, -inf
      %275 = vst.msk [vmem:[#allocation4 + $0x28] sm:$0xff] %vm269, -inf
      %276 = vst.msk [vmem:[#allocation4 + $0x30] sm:$0xff] %vm269, -inf
      %277 = vst.msk [vmem:[#allocation4 + $0x38] sm:$0xff] %vm269, -inf
      %278 = vst.msk [vmem:[#allocation4 + $0x40] sm:$0xff] %vm269, -inf
      %279 = vst.msk [vmem:[#allocation4 + $0x48] sm:$0xff] %vm269, -inf
      %280 = vst.msk [vmem:[#allocation4 + $0x50] sm:$0xff] %vm269, -inf
      %281 = vst.msk [vmem:[#allocation4 + $0x58] sm:$0xff] %vm269, -inf
      %282 = vst.msk [vmem:[#allocation4 + $0x60] sm:$0xff] %vm269, -inf
      %283 = vst.msk [vmem:[#allocation4 + $0x68] sm:$0xff] %vm269, -inf
      %284 = vst.msk [vmem:[#allocation4 + $0x70] sm:$0xff] %vm269, -inf
      %285 = vst.msk [vmem:[#allocation4 + $0x78] sm:$0xff] %vm269, -inf
      %286 = vst.msk [vmem:[#allocation5] sm:$0xff] %vm269, 0.0
      %287 = vst.msk [vmem:[#allocation5 + $0x8] sm:$0xff] %vm269, 0.0
      %288 = vst.msk [vmem:[#allocation5 + $0x10] sm:$0xff] %vm269, 0.0
      %289 = vst.msk [vmem:[#allocation5 + $0x18] sm:$0xff] %vm269, 0.0
      %290 = vst.msk [vmem:[#allocation5 + $0x20] sm:$0xff] %vm269, 0.0
      %291 = vst.msk [vmem:[#allocation5 + $0x28] sm:$0xff] %vm269, 0.0
      %292 = vst.msk [vmem:[#allocation5 + $0x30] sm:$0xff] %vm269, 0.0
      %293 = vst.msk [vmem:[#allocation5 + $0x38] sm:$0xff] %vm269, 0.0
      %294 = vst.msk [vmem:[#allocation5 + $0x40] sm:$0xff] %vm269, 0.0
      %295 = vst.msk [vmem:[#allocation5 + $0x48] sm:$0xff] %vm269, 0.0
      %296 = vst.msk [vmem:[#allocation5 + $0x50] sm:$0xff] %vm269, 0.0
      %297 = vst.msk [vmem:[#allocation5 + $0x58] sm:$0xff] %vm269, 0.0
      %298 = vst.msk [vmem:[#allocation5 + $0x60] sm:$0xff] %vm269, 0.0
      %299 = vst.msk [vmem:[#allocation5 + $0x68] sm:$0xff] %vm269, 0.0
      %300 = vst.msk [vmem:[#allocation5 + $0x70] sm:$0xff] %vm269, 0.0
      %301 = vst.msk [vmem:[#allocation5 + $0x78] sm:$0xff] %vm269, 0.0
      %302 = vst [vmem:[#allocation3] sm:$0xff] 0.0
      %303 = vst [vmem:[#allocation3 + $0x8] sm:$0xff] 0.0
      %304 = vst [vmem:[#allocation3 + $0x10] sm:$0xff] 0.0
      %305 = vst [vmem:[#allocation3 + $0x18] sm:$0xff] 0.0
      %306 = vst [vmem:[#allocation3 + $0x20] sm:$0xff] 0.0
      %307 = vst [vmem:[#allocation3 + $0x28] sm:$0xff] 0.0
      %308 = vst [vmem:[#allocation3 + $0x30] sm:$0xff] 0.0
      %309 = vst [vmem:[#allocation3 + $0x38] sm:$0xff] 0.0
      %310 = vst [vmem:[#allocation3 + $0x40] sm:$0xff] 0.0
      %311 = vst [vmem:[#allocation3 + $0x48] sm:$0xff] 0.0
      %312 = vst [vmem:[#allocation3 + $0x50] sm:$0xff] 0.0
      %313 = vst [vmem:[#allocation3 + $0x58] sm:$0xff] 0.0
      %314 = vst [vmem:[#allocation3 + $0x60] sm:$0xff] 0.0
      %315 = vst [vmem:[#allocation3 + $0x68] sm:$0xff] 0.0
      %316 = vst [vmem:[#allocation3 + $0x70] sm:$0xff] 0.0
      %317 = vst [vmem:[#allocation3 + $0x78] sm:$0xff] 0.0
    $region29: #{tpu_custom_call.1} parent=1 // pred_fallthru
      _
    %v318 = vld [vmem:[#allocation9] sm:$0xff]
    %v319 = vld [vmem:[#allocation9 + $0x8] sm:$0xff]
    %v320 = vld [vmem:[#allocation9 + $0x10] sm:$0xff]
    %v321 = vld [vmem:[#allocation9 + $0x18] sm:$0xff]
    %v322 = vld [vmem:[#allocation9 + $0x20] sm:$0xff]
    %v323 = vld [vmem:[#allocation9 + $0x28] sm:$0xff]
    %v324 = vld [vmem:[#allocation9 + $0x30] sm:$0xff]
    %v325 = vld [vmem:[#allocation9 + $0x38] sm:$0xff]
    %v326 = vld [vmem:[#allocation9 + $0x40] sm:$0xff]
    %v327 = vld [vmem:[#allocation9 + $0x48] sm:$0xff]
    %v328 = vld [vmem:[#allocation9 + $0x50] sm:$0xff]
    %v329 = vld [vmem:[#allocation9 + $0x58] sm:$0xff]
    %v330 = vld [vmem:[#allocation9 + $0x60] sm:$0xff]
    %v331 = vld [vmem:[#allocation9 + $0x68] sm:$0xff]
    %v332 = vld [vmem:[#allocation9 + $0x70] sm:$0xff]
    %v333 = vld [vmem:[#allocation9 + $0x78] sm:$0xff]
    %v334 = vld [vmem:[#allocation11 + $0x8] sm:$0xff]
    %v335 = vld [vmem:[#allocation11 + $0x10] sm:$0xff]
    %v336 = vld [vmem:[#allocation11 + $0x20] sm:$0xff]
    %v337 = vld [vmem:[#allocation11 + $0x28] sm:$0xff]
    %v338 = vld [vmem:[#allocation11 + $0x38] sm:$0xff]
    %v339 = vld [vmem:[#allocation11 + $0x40] sm:$0xff]
    %v340 = vld [vmem:[#allocation11 + $0x50] sm:$0xff]
    %v341 = vld [vmem:[#allocation11 + $0x58] sm:$0xff]
    %v342 = vld [vmem:[#allocation11 + $0x68] sm:$0xff]
    %v343 = vld [vmem:[#allocation11 + $0x70] sm:$0xff]
    %v344 = vld [vmem:[#allocation11 + $0x80] sm:$0xff]
    %v345 = vld [vmem:[#allocation11 + $0x88] sm:$0xff]
    %v346 = vld [vmem:[#allocation11 + $0x98] sm:$0xff]
    %v347 = vld [vmem:[#allocation11 + $0xa0] sm:$0xff]
    %v348 = vld [vmem:[#allocation11 + $0xb0] sm:$0xff]
    %v349 = vld [vmem:[#allocation11 + $0xb8] sm:$0xff]
    %v350 = vld [vmem:[#allocation11 + $0xc8] sm:$0xff]
    %v351 = vld [vmem:[#allocation11 + $0xd0] sm:$0xff]
    %v352 = vld [vmem:[#allocation11 + $0xe0] sm:$0xff]
    %v353 = vld [vmem:[#allocation11 + $0xe8] sm:$0xff]
    %v354 = vld [vmem:[#allocation11 + $0xf8] sm:$0xff]
    %v355 = vld [vmem:[#allocation11 + $0x100] sm:$0xff]
    %v356 = vld [vmem:[#allocation11 + $0x110] sm:$0xff]
    %v357 = vld [vmem:[#allocation11 + $0x118] sm:$0xff]
    %v358 = vld [vmem:[#allocation11 + $0x128] sm:$0xff]
    %v359 = vld [vmem:[#allocation11 + $0x130] sm:$0xff]
    %v360 = vld [vmem:[#allocation11 + $0x140] sm:$0xff]
    %v361 = vld [vmem:[#allocation11 + $0x148] sm:$0xff]
    %v362 = vld [vmem:[#allocation11 + $0x158] sm:$0xff]
    %v363 = vld [vmem:[#allocation11 + $0x160] sm:$0xff]
    %v364 = vld [vmem:[#allocation11 + $0x170] sm:$0xff]
    %v365 = vld [vmem:[#allocation11 + $0x178] sm:$0xff]
    %366 = vmatprep.subr.mxu0 %v365
    %367 = vmatpush1.msra.mxu0 %v364
    %368 = vmatprep.subr.mxu0 %v363
    %369 = vmatpush1.msra.mxu0 %v362
    %370 = vmatprep.subr.mxu0 %v361
    %371 = vmatpush1.msra.mxu0 %v360
    %372 = vmatprep.subr.mxu0 %v359
    %373 = vmatpush1.msra.mxu0 %v358
    %374 = vmatprep.subr.mxu0 %v357
    %375 = vmatpush1.msra.mxu0 %v356
    %376 = vmatprep.subr.mxu0 %v355
    %377 = vmatpush1.msra.mxu0 %v354
    %378 = vmatprep.subr.mxu0 %v353
    %379 = vmatpush1.msra.mxu0 %v352
    %380 = vmatprep.subr.mxu0 %v351
    %381 = vmatpush1.msra.mxu0 %v350
    %382 = vmatprep.subr.mxu0 %v349
    %383 = vmatpush1.msra.mxu0 %v348
    %384 = vmatprep.subr.mxu0 %v347
    %385 = vmatpush1.msra.mxu0 %v346
    %386 = vmatprep.subr.mxu0 %v345
    %387 = vmatpush1.msra.mxu0 %v344
    %388 = vmatprep.subr.mxu0 %v343
    %389 = vmatpush1.msra.mxu0 %v342
    %390 = vmatprep.subr.mxu0 %v341
    %391 = vmatpush1.msra.mxu0 %v340
    %392 = vmatprep.subr.mxu0 %v339
    %393 = vmatpush1.msra.mxu0 %v338
    %394 = vmatprep.subr.mxu0 %v337
    %395 = vmatpush1.msra.mxu0 %v336
    %396 = vmatprep.subr.mxu0 %v335
    %397 = vmatpush1.msra.mxu0 %v334
    %398 = vmatprep.subr.mxu0 0.0
    %399 = vmatpush2.msra.mxu0 0.0
    %400 = vmatprep.subr.mxu0 0.0
    %401 = vmatpush2.msra.mxu0 0.0
    %402 = vmatprep.subr.mxu0 0.0
    %403 = vmatpush2.msra.mxu0 0.0
    %404 = vmatprep.subr.mxu0 0.0
    %405 = vmatpush2.msra.mxu0 0.0
    %406 = vmatprep.subr.mxu0 0.0
    %407 = vmatpush2.msra.mxu0 0.0
    %408 = vmatprep.subr.mxu0 0.0
    %409 = vmatpush2.msra.mxu0 0.0
    %410 = vmatprep.subr.mxu0 0.0
    %411 = vmatpush2.msra.mxu0 0.0
    %412 = vmatprep.subr.mxu0 0.0
    %413 = vmatpush2.msra.mxu0 0.0
    %414 = vmatprep.subr.mxu0 0.0
    %415 = vmatpush2.msra.mxu0 0.0
    %416 = vmatprep.subr.mxu0 0.0
    %417 = vmatpush2.msra.mxu0 0.0
    %418 = vmatprep.subr.mxu0 0.0
    %419 = vmatpush2.msra.mxu0 0.0
    %420 = vmatprep.subr.mxu0 0.0
    %421 = vmatpush2.msra.mxu0 0.0
    %422 = vmatprep.subr.mxu0 0.0
    %423 = vmatpush2.msra.mxu0 0.0
    %424 = vmatprep.subr.mxu0 0.0
    %425 = vmatpush2.msra.mxu0 0.0
    %426 = vmatprep.subr.mxu0 0.0
    %427 = vmatpush2.msra.mxu0 0.0
    %428 = vmatprep.subr.mxu0 0.0
    %429 = vmatpush2.msra.mxu0 0.0
    %430 = vmatprep.mubr.f32.mxu0 0.0
    %431 = vmatmul.mubr.f32.gmra.mxu0 %v318
    %v432 = vpop.f32.mrf.mxu0
    %v433 = vadd.f32 0.0, %v432
    %v434 = vpop.f32.mrf.mxu0
    %v435 = vadd.f32 0.0, %v434
    %436 = vmatprep.mubr.f32.mxu0 0.0
    %437 = vmatmul.mubr.f32.gmra.mxu0 %v319
    %v438 = vpop.f32.mrf.mxu0
    %v439 = vadd.f32 0.0, %v438
    %v440 = vpop.f32.mrf.mxu0
    %v441 = vadd.f32 0.0, %v440
    %442 = vmatprep.mubr.f32.mxu0 0.0
    %443 = vmatmul.mubr.f32.gmra.mxu0 %v320
    %v444 = vpop.f32.mrf.mxu0
    %v445 = vadd.f32 0.0, %v444
    %v446 = vpop.f32.mrf.mxu0
    %v447 = vadd.f32 0.0, %v446
    %448 = vmatprep.mubr.f32.mxu0 0.0
    %449 = vmatmul.mubr.f32.gmra.mxu0 %v321
    %v450 = vpop.f32.mrf.mxu0
    %v451 = vadd.f32 0.0, %v450
    %v452 = vpop.f32.mrf.mxu0
    %v453 = vadd.f32 0.0, %v452
    %454 = vmatprep.mubr.f32.mxu0 0.0
    %455 = vmatmul.mubr.f32.gmra.mxu0 %v322
    %v456 = vpop.f32.mrf.mxu0
    %v457 = vadd.f32 0.0, %v456
    %v458 = vpop.f32.mrf.mxu0
    %v459 = vadd.f32 0.0, %v458
    %460 = vmatprep.mubr.f32.mxu0 0.0
    %461 = vmatmul.mubr.f32.gmra.mxu0 %v323
    %v462 = vpop.f32.mrf.mxu0
    %v463 = vadd.f32 0.0, %v462
    %v464 = vpop.f32.mrf.mxu0
    %v465 = vadd.f32 0.0, %v464
    %466 = vmatprep.mubr.f32.mxu0 0.0
    %467 = vmatmul.mubr.f32.gmra.mxu0 %v324
    %v468 = vpop.f32.mrf.mxu0
    %v469 = vadd.f32 0.0, %v468
    %v470 = vpop.f32.mrf.mxu0
    %v471 = vadd.f32 0.0, %v470
    %472 = vmatprep.mubr.f32.mxu0 0.0
    %473 = vmatmul.mubr.f32.gmra.mxu0 %v325
    %v474 = vpop.f32.mrf.mxu0
    %v475 = vadd.f32 0.0, %v474
    %v476 = vpop.f32.mrf.mxu0
    %v477 = vadd.f32 0.0, %v476
    %478 = vmatprep.mubr.f32.mxu0 0.0
    %479 = vmatmul.mubr.f32.gmra.mxu0 %v326
    %v480 = vpop.f32.mrf.mxu0
    %v481 = vadd.f32 0.0, %v480
    %v482 = vpop.f32.mrf.mxu0
    %v483 = vadd.f32 0.0, %v482
    %484 = vmatprep.mubr.f32.mxu0 0.0
    %485 = vmatmul.mubr.f32.gmra.mxu0 %v327
    %v486 = vpop.f32.mrf.mxu0
    %v487 = vadd.f32 0.0, %v486
    %v488 = vpop.f32.mrf.mxu0
    %v489 = vadd.f32 0.0, %v488
    %490 = vmatprep.mubr.f32.mxu0 0.0
    %491 = vmatmul.mubr.f32.gmra.mxu0 %v328
    %v492 = vpop.f32.mrf.mxu0
    %v493 = vadd.f32 0.0, %v492
    %v494 = vpop.f32.mrf.mxu0
    %v495 = vadd.f32 0.0, %v494
    %496 = vmatprep.mubr.f32.mxu0 0.0
    %497 = vmatmul.mubr.f32.gmra.mxu0 %v329
    %v498 = vpop.f32.mrf.mxu0
    %v499 = vadd.f32 0.0, %v498
    %v500 = vpop.f32.mrf.mxu0
    %v501 = vadd.f32 0.0, %v500
    %502 = vmatprep.mubr.f32.mxu0 0.0
    %503 = vmatmul.mubr.f32.gmra.mxu0 %v330
    %v504 = vpop.f32.mrf.mxu0
    %v505 = vadd.f32 0.0, %v504
    %v506 = vpop.f32.mrf.mxu0
    %v507 = vadd.f32 0.0, %v506
    %508 = vmatprep.mubr.f32.mxu0 0.0
    %509 = vmatmul.mubr.f32.gmra.mxu0 %v331
    %v510 = vpop.f32.mrf.mxu0
    %v511 = vadd.f32 0.0, %v510
    %v512 = vpop.f32.mrf.mxu0
    %v513 = vadd.f32 0.0, %v512
    %514 = vmatprep.mubr.f32.mxu0 0.0
    %515 = vmatmul.mubr.f32.gmra.mxu0 %v332
    %v516 = vpop.f32.mrf.mxu0
    %v517 = vadd.f32 0.0, %v516
    %v518 = vpop.f32.mrf.mxu0
    %v519 = vadd.f32 0.0, %v518
    %520 = vmatprep.mubr.f32.mxu0 0.0
    %521 = vmatmul.mubr.f32.gmra.mxu0 %v333
    %v522 = vpop.f32.mrf.mxu0
    %v523 = vadd.f32 0.0, %v522
    %v524 = vpop.f32.mrf.mxu0
    %v525 = vadd.f32 0.0, %v524
    %526 = vdwg.mxu0
    %v527 = vld [vmem:[#allocation2] sm:$0xff]
    %v528 = vld [vmem:[#allocation2 + $0x8] sm:$0xff]
    %v529 = vld [vmem:[#allocation2 + $0x10] sm:$0xff]
    %v530 = vld [vmem:[#allocation2 + $0x18] sm:$0xff]
    %v531 = vld [vmem:[#allocation2 + $0x20] sm:$0xff]
    %v532 = vld [vmem:[#allocation2 + $0x28] sm:$0xff]
    %v533 = vld [vmem:[#allocation2 + $0x30] sm:$0xff]
    %v534 = vld [vmem:[#allocation2 + $0x38] sm:$0xff]
    %v535 = vld [vmem:[#allocation2 + $0x40] sm:$0xff]
    %v536 = vld [vmem:[#allocation2 + $0x48] sm:$0xff]
    %v537 = vld [vmem:[#allocation2 + $0x50] sm:$0xff]
    %v538 = vld [vmem:[#allocation2 + $0x58] sm:$0xff]
    %v539 = vld [vmem:[#allocation2 + $0x60] sm:$0xff]
    %v540 = vld [vmem:[#allocation2 + $0x68] sm:$0xff]
    %v541 = vld [vmem:[#allocation2 + $0x70] sm:$0xff]
    %v542 = vld [vmem:[#allocation2 + $0x78] sm:$0xff]
    %543 = vmatprep.subr.mxu0 0.0
    %544 = vmatpush1.xpose.msra.mxu0 %v523
    %545 = vmatprep.subr.mxu0 0.0
    %546 = vmatpush1.xpose.msra.mxu0 %v517
    %547 = vmatprep.subr.mxu0 0.0
    %548 = vmatpush1.xpose.msra.mxu0 %v511
    %549 = vmatprep.subr.mxu0 0.0
    %550 = vmatpush1.xpose.msra.mxu0 %v505
    %551 = vmatprep.subr.mxu0 0.0
    %552 = vmatpush1.xpose.msra.mxu0 %v499
    %553 = vmatprep.subr.mxu0 0.0
    %554 = vmatpush1.xpose.msra.mxu0 %v493
    %555 = vmatprep.subr.mxu0 0.0
    %556 = vmatpush1.xpose.msra.mxu0 %v487
    %557 = vmatprep.subr.mxu0 0.0
    %558 = vmatpush1.xpose.msra.mxu0 %v481
    %559 = vmatprep.subr.mxu0 0.0
    %560 = vmatpush1.xpose.msra.mxu0 %v475
    %561 = vmatprep.subr.mxu0 0.0
    %562 = vmatpush1.xpose.msra.mxu0 %v469
    %563 = vmatprep.subr.mxu0 0.0
    %564 = vmatpush1.xpose.msra.mxu0 %v463
    %565 = vmatprep.subr.mxu0 0.0
    %566 = vmatpush1.xpose.msra.mxu0 %v457
    %567 = vmatprep.subr.mxu0 0.0
    %568 = vmatpush1.xpose.msra.mxu0 %v451
    %569 = vmatprep.subr.mxu0 0.0
    %570 = vmatpush1.xpose.msra.mxu0 %v445
    %571 = vmatprep.subr.mxu0 0.0
    %572 = vmatpush1.xpose.msra.mxu0 %v439
    %573 = vmatprep.subr.mxu0 0.0
    %574 = vmatpush1.xpose.msra.mxu0 %v433
    %575 = vmatprep.subr.mxu0 0.0
    %576 = vmatpush2.xpose.msra.mxu0 0.0
    %577 = vmatprep.subr.mxu0 0.0
    %578 = vmatpush2.xpose.msra.mxu0 0.0
    %579 = vmatprep.subr.mxu0 0.0
    %580 = vmatpush2.xpose.msra.mxu0 0.0
    %581 = vmatprep.subr.mxu0 0.0
    %582 = vmatpush2.xpose.msra.mxu0 0.0
    %583 = vmatprep.subr.mxu0 0.0
    %584 = vmatpush2.xpose.msra.mxu0 0.0
    %585 = vmatprep.subr.mxu0 0.0
    %586 = vmatpush2.xpose.msra.mxu0 0.0
    %587 = vmatprep.subr.mxu0 0.0
    %588 = vmatpush2.xpose.msra.mxu0 0.0
    %589 = vmatprep.subr.mxu0 0.0
    %590 = vmatpush2.xpose.msra.mxu0 0.0
    %591 = vmatprep.subr.mxu0 0.0
    %592 = vmatpush2.xpose.msra.mxu0 0.0
    %593 = vmatprep.subr.mxu0 0.0
    %594 = vmatpush2.xpose.msra.mxu0 0.0
    %595 = vmatprep.subr.mxu0 0.0
    %596 = vmatpush2.xpose.msra.mxu0 0.0
    %597 = vmatprep.subr.mxu0 0.0
    %598 = vmatpush2.xpose.msra.mxu0 0.0
    %599 = vmatprep.subr.mxu0 0.0
    %600 = vmatpush2.xpose.msra.mxu0 0.0
    %601 = vmatprep.subr.mxu0 0.0
    %602 = vmatpush2.xpose.msra.mxu0 0.0
    %603 = vmatprep.subr.mxu0 0.0
    %604 = vmatpush2.xpose.msra.mxu0 0.0
    %605 = vmatprep.subr.mxu0 0.0
    %606 = vmatpush2.xpose.msra.mxu0 0.0
    %607 = vmatprep.mubr.f32.mxu0 0.0
    %608 = vmatmul.mubr.f32.gmra.mxu0 %v527
    %v609 = vpop.f32.mrf.mxu0
    %v610 = vadd.f32 0.0, %v609
    %v611 = vpop.f32.mrf.mxu0
    %612 = vmatprep.mubr.f32.mxu0 0.0
    %613 = vmatmul.mubr.f32.gmra.mxu0 %v528
    %v614 = vpop.f32.mrf.mxu0
    %v615 = vadd.f32 0.0, %v614
    %v616 = vpop.f32.mrf.mxu0
    %617 = vmatprep.mubr.f32.mxu0 0.0
    %618 = vmatmul.mubr.f32.gmra.mxu0 %v529
    %v619 = vpop.f32.mrf.mxu0
    %v620 = vadd.f32 0.0, %v619
    %v621 = vpop.f32.mrf.mxu0
    %622 = vmatprep.mubr.f32.mxu0 0.0
    %623 = vmatmul.mubr.f32.gmra.mxu0 %v530
    %v624 = vpop.f32.mrf.mxu0
    %v625 = vadd.f32 0.0, %v624
    %v626 = vpop.f32.mrf.mxu0
    %627 = vmatprep.mubr.f32.mxu0 0.0
    %628 = vmatmul.mubr.f32.gmra.mxu0 %v531
    %v629 = vpop.f32.mrf.mxu0
    %v630 = vadd.f32 0.0, %v629
    %v631 = vpop.f32.mrf.mxu0
    %632 = vmatprep.mubr.f32.mxu0 0.0
    %633 = vmatmul.mubr.f32.gmra.mxu0 %v532
    %v634 = vpop.f32.mrf.mxu0
    %v635 = vadd.f32 0.0, %v634
    %v636 = vpop.f32.mrf.mxu0
    %637 = vmatprep.mubr.f32.mxu0 0.0
    %638 = vmatmul.mubr.f32.gmra.mxu0 %v533
    %v639 = vpop.f32.mrf.mxu0
    %v640 = vadd.f32 0.0, %v639
    %v641 = vpop.f32.mrf.mxu0
    %642 = vmatprep.mubr.f32.mxu0 0.0
    %643 = vmatmul.mubr.f32.gmra.mxu0 %v534
    %v644 = vpop.f32.mrf.mxu0
    %v645 = vadd.f32 0.0, %v644
    %v646 = vpop.f32.mrf.mxu0
    %647 = vmatprep.mubr.f32.mxu0 0.0
    %648 = vmatmul.mubr.f32.gmra.mxu0 %v535
    %v649 = vpop.f32.mrf.mxu0
    %v650 = vadd.f32 0.0, %v649
    %v651 = vpop.f32.mrf.mxu0
    %652 = vmatprep.mubr.f32.mxu0 0.0
    %653 = vmatmul.mubr.f32.gmra.mxu0 %v536
    %v654 = vpop.f32.mrf.mxu0
    %v655 = vadd.f32 0.0, %v654
    %v656 = vpop.f32.mrf.mxu0
    %657 = vmatprep.mubr.f32.mxu0 0.0
    %658 = vmatmul.mubr.f32.gmra.mxu0 %v537
    %v659 = vpop.f32.mrf.mxu0
    %v660 = vadd.f32 0.0, %v659
    %v661 = vpop.f32.mrf.mxu0
    %662 = vmatprep.mubr.f32.mxu0 0.0
    %663 = vmatmul.mubr.f32.gmra.mxu0 %v538
    %v664 = vpop.f32.mrf.mxu0
    %v665 = vadd.f32 0.0, %v664
    %v666 = vpop.f32.mrf.mxu0
    %667 = vmatprep.mubr.f32.mxu0 0.0
    %668 = vmatmul.mubr.f32.gmra.mxu0 %v539
    %v669 = vpop.f32.mrf.mxu0
    %v670 = vadd.f32 0.0, %v669
    %v671 = vpop.f32.mrf.mxu0
    %672 = vmatprep.mubr.f32.mxu0 0.0
    %673 = vmatmul.mubr.f32.gmra.mxu0 %v540
    %v674 = vpop.f32.mrf.mxu0
    %v675 = vadd.f32 0.0, %v674
    %v676 = vpop.f32.mrf.mxu0
    %677 = vmatprep.mubr.f32.mxu0 0.0
    %678 = vmatmul.mubr.f32.gmra.mxu0 %v541
    %v679 = vpop.f32.mrf.mxu0
    %v680 = vadd.f32 0.0, %v679
    %v681 = vpop.f32.mrf.mxu0
    %682 = vmatprep.mubr.f32.mxu0 0.0
    %683 = vmatmul.mubr.f32.gmra.mxu0 %v542
    %v684 = vpop.f32.mrf.mxu0
    %v685 = vadd.f32 0.0, %v684
    %v686 = vpop.f32.mrf.mxu0
    %687 = vdwg.mxu0
    %s688 = smul.u32 0, 128
    %v689 = vlaneseq
    %v690 = vand.u32 %v689, 127
    %v691 = vstv %s688
    %v692 = vadd.s32 %v691, %v690
    %vm693 = vcmp.lt.s32.totalorder %v692, 6
    %v694 = vsel %vm693, %v610, -inf
    %v695 = vsel %vm693, %v615, -inf
    %v696 = vsel %vm693, %v620, -inf
    %v697 = vsel %vm693, %v625, -inf
    %v698 = vsel %vm693, %v630, -inf
    %v699 = vsel %vm693, %v635, -inf
    %v700 = vsel %vm693, %v640, -inf
    %v701 = vsel %vm693, %v645, -inf
    %v702 = vsel %vm693, %v650, -inf
    %v703 = vsel %vm693, %v655, -inf
    %v704 = vsel %vm693, %v660, -inf
    %v705 = vsel %vm693, %v665, -inf
    %v706 = vsel %vm693, %v670, -inf
    %v707 = vsel %vm693, %v675, -inf
    %v708 = vsel %vm693, %v680, -inf
    %v709 = vsel %vm693, %v685, -inf
    %v710 = vld [vmem:[#allocation4] sm:$0xff]
    %v711 = vld [vmem:[#allocation4 + $0x8] sm:$0xff]
    %v712 = vld [vmem:[#allocation4 + $0x10] sm:$0xff]
    %v713 = vld [vmem:[#allocation4 + $0x18] sm:$0xff]
    %v714 = vld [vmem:[#allocation4 + $0x20] sm:$0xff]
    %v715 = vld [vmem:[#allocation4 + $0x28] sm:$0xff]
    %v716 = vld [vmem:[#allocation4 + $0x30] sm:$0xff]
    %v717 = vld [vmem:[#allocation4 + $0x38] sm:$0xff]
    %v718 = vld [vmem:[#allocation4 + $0x40] sm:$0xff]
    %v719 = vld [vmem:[#allocation4 + $0x48] sm:$0xff]
    %v720 = vld [vmem:[#allocation4 + $0x50] sm:$0xff]
    %v721 = vld [vmem:[#allocation4 + $0x58] sm:$0xff]
    %v722 = vld [vmem:[#allocation4 + $0x60] sm:$0xff]
    %v723 = vld [vmem:[#allocation4 + $0x68] sm:$0xff]
    %v724 = vld [vmem:[#allocation4 + $0x70] sm:$0xff]
    %v725 = vld [vmem:[#allocation4 + $0x78] sm:$0xff]
    %726 = vmax.xlane.f32.xlu0 %v694
    %v727 = vpop.xlane.xlu0 %726
    %728 = vmax.xlane.f32.xlu0 %v695
    %v729 = vpop.xlane.xlu0 %728
    %730 = vmax.xlane.f32.xlu0 %v696
    %v731 = vpop.xlane.xlu0 %730
    %732 = vmax.xlane.f32.xlu0 %v697
    %v733 = vpop.xlane.xlu0 %732
    %734 = vmax.xlane.f32.xlu0 %v698
    %v735 = vpop.xlane.xlu0 %734
    %736 = vmax.xlane.f32.xlu0 %v699
    %v737 = vpop.xlane.xlu0 %736
    %738 = vmax.xlane.f32.xlu0 %v700
    %v739 = vpop.xlane.xlu0 %738
    %740 = vmax.xlane.f32.xlu0 %v701
    %v741 = vpop.xlane.xlu0 %740
    %742 = vmax.xlane.f32.xlu0 %v702
    %v743 = vpop.xlane.xlu0 %742
    %744 = vmax.xlane.f32.xlu0 %v703
    %v745 = vpop.xlane.xlu0 %744
    %746 = vmax.xlane.f32.xlu0 %v704
    %v747 = vpop.xlane.xlu0 %746
    %748 = vmax.xlane.f32.xlu0 %v705
    %v749 = vpop.xlane.xlu0 %748
    %750 = vmax.xlane.f32.xlu0 %v706
    %v751 = vpop.xlane.xlu0 %750
    %752 = vmax.xlane.f32.xlu0 %v707
    %v753 = vpop.xlane.xlu0 %752
    %754 = vmax.xlane.f32.xlu0 %v708
    %v755 = vpop.xlane.xlu0 %754
    %756 = vmax.xlane.f32.xlu0 %v709
    %v757 = vpop.xlane.xlu0 %756
    %v758 = vmax.f32 %v710, %v727
    %v759 = vmax.f32 %v711, %v729
    %v760 = vmax.f32 %v712, %v731
    %v761 = vmax.f32 %v713, %v733
    %v762 = vmax.f32 %v714, %v735
    %v763 = vmax.f32 %v715, %v737
    %v764 = vmax.f32 %v716, %v739
    %v765 = vmax.f32 %v717, %v741
    %v766 = vmax.f32 %v718, %v743
    %v767 = vmax.f32 %v719, %v745
    %v768 = vmax.f32 %v720, %v747
    %v769 = vmax.f32 %v721, %v749
    %v770 = vmax.f32 %v722, %v751
    %v771 = vmax.f32 %v723, %v753
    %v772 = vmax.f32 %v724, %v755
    %v773 = vmax.f32 %v725, %v757
    %v774 = vsub.f32 %v710, %v758
    %v775 = vsub.f32 %v711, %v759
    %v776 = vsub.f32 %v712, %v760
    %v777 = vsub.f32 %v713, %v761
    %v778 = vsub.f32 %v714, %v762
    %v779 = vsub.f32 %v715, %v763
    %v780 = vsub.f32 %v716, %v764
    %v781 = vsub.f32 %v717, %v765
    %v782 = vsub.f32 %v718, %v766
    %v783 = vsub.f32 %v719, %v767
    %v784 = vsub.f32 %v720, %v768
    %v785 = vsub.f32 %v721, %v769
    %v786 = vsub.f32 %v722, %v770
    %v787 = vsub.f32 %v723, %v771
    %v788 = vsub.f32 %v724, %v772
    %v789 = vsub.f32 %v725, %v773
    %v790 = vmul.f32 %v774, 1.442695
    %v791 = vpow.pop %v790
    %v792 = vmul.f32 %v775, 1.442695
    %v793 = vpow.pop %v792
    %v794 = vmul.f32 %v776, 1.442695
    %v795 = vpow.pop %v794
    %v796 = vmul.f32 %v777, 1.442695
    %v797 = vpow.pop %v796
    %v798 = vmul.f32 %v778, 1.442695
    %v799 = vpow.pop %v798
    %v800 = vmul.f32 %v779, 1.442695
    %v801 = vpow.pop %v800
    %v802 = vmul.f32 %v780, 1.442695
    %v803 = vpow.pop %v802
    %v804 = vmul.f32 %v781, 1.442695
    %v805 = vpow.pop %v804
    %v806 = vmul.f32 %v782, 1.442695
    %v807 = vpow.pop %v806
    %v808 = vmul.f32 %v783, 1.442695
    %v809 = vpow.pop %v808
    %v810 = vmul.f32 %v784, 1.442695
    %v811 = vpow.pop %v810
    %v812 = vmul.f32 %v785, 1.442695
    %v813 = vpow.pop %v812
    %v814 = vmul.f32 %v786, 1.442695
    %v815 = vpow.pop %v814
    %v816 = vmul.f32 %v787, 1.442695
    %v817 = vpow.pop %v816
    %v818 = vmul.f32 %v788, 1.442695
    %v819 = vpow.pop %v818
    %v820 = vmul.f32 %v789, 1.442695
    %v821 = vpow.pop %v820
    %823 = vset.pattern.permute.xlu0 0
    %824 = vperm.xlu0 %823, %v758
    %v825 = vpop.permute.xlu0 %824
    %828 = vset.pattern.permute.xlu0 0
    %829 = vperm.xlu0 %828, %v759
    %v830 = vpop.permute.xlu0 %829
    %833 = vset.pattern.permute.xlu0 0
    %834 = vperm.xlu0 %833, %v760
    %v835 = vpop.permute.xlu0 %834
    %838 = vset.pattern.permute.xlu0 0
    %839 = vperm.xlu0 %838, %v761
    %v840 = vpop.permute.xlu0 %839
    %843 = vset.pattern.permute.xlu0 0
    %844 = vperm.xlu0 %843, %v762
    %v845 = vpop.permute.xlu0 %844
    %848 = vset.pattern.permute.xlu0 0
    %849 = vperm.xlu0 %848, %v763
    %v850 = vpop.permute.xlu0 %849
    %853 = vset.pattern.permute.xlu0 0
    %854 = vperm.xlu0 %853, %v764
    %v855 = vpop.permute.xlu0 %854
    %858 = vset.pattern.permute.xlu0 0
    %859 = vperm.xlu0 %858, %v765
    %v860 = vpop.permute.xlu0 %859
    %863 = vset.pattern.permute.xlu0 0
    %864 = vperm.xlu0 %863, %v766
    %v865 = vpop.permute.xlu0 %864
    %868 = vset.pattern.permute.xlu0 0
    %869 = vperm.xlu0 %868, %v767
    %v870 = vpop.permute.xlu0 %869
    %873 = vset.pattern.permute.xlu0 0
    %874 = vperm.xlu0 %873, %v768
    %v875 = vpop.permute.xlu0 %874
    %878 = vset.pattern.permute.xlu0 0
    %879 = vperm.xlu0 %878, %v769
    %v880 = vpop.permute.xlu0 %879
    %883 = vset.pattern.permute.xlu0 0
    %884 = vperm.xlu0 %883, %v770
    %v885 = vpop.permute.xlu0 %884
    %888 = vset.pattern.permute.xlu0 0
    %889 = vperm.xlu0 %888, %v771
    %v890 = vpop.permute.xlu0 %889
    %893 = vset.pattern.permute.xlu0 0
    %894 = vperm.xlu0 %893, %v772
    %v895 = vpop.permute.xlu0 %894
    %898 = vset.pattern.permute.xlu0 0
    %899 = vperm.xlu0 %898, %v773
    %v900 = vpop.permute.xlu0 %899
    %v902 = vsub.f32 %v694, %v825
    %v903 = vsub.f32 %v695, %v830
    %v904 = vsub.f32 %v696, %v835
    %v905 = vsub.f32 %v697, %v840
    %v906 = vsub.f32 %v698, %v845
    %v907 = vsub.f32 %v699, %v850
    %v908 = vsub.f32 %v700, %v855
    %v909 = vsub.f32 %v701, %v860
    %v910 = vsub.f32 %v702, %v865
    %v911 = vsub.f32 %v703, %v870
    %v912 = vsub.f32 %v704, %v875
    %v913 = vsub.f32 %v705, %v880
    %v914 = vsub.f32 %v706, %v885
    %v915 = vsub.f32 %v707, %v890
    %v916 = vsub.f32 %v708, %v895
    %v917 = vsub.f32 %v709, %v900
    %v918 = vmul.f32 %v902, 1.442695
    %v919 = vpow.pop %v918
    %v920 = vmul.f32 %v903, 1.442695
    %v921 = vpow.pop %v920
    %v922 = vmul.f32 %v904, 1.442695
    %v923 = vpow.pop %v922
    %v924 = vmul.f32 %v905, 1.442695
    %v925 = vpow.pop %v924
    %v926 = vmul.f32 %v906, 1.442695
    %v927 = vpow.pop %v926
    %v928 = vmul.f32 %v907, 1.442695
    %v929 = vpow.pop %v928
    %v930 = vmul.f32 %v908, 1.442695
    %v931 = vpow.pop %v930
    %v932 = vmul.f32 %v909, 1.442695
    %v933 = vpow.pop %v932
    %v934 = vmul.f32 %v910, 1.442695
    %v935 = vpow.pop %v934
    %v936 = vmul.f32 %v911, 1.442695
    %v937 = vpow.pop %v936
    %v938 = vmul.f32 %v912, 1.442695
    %v939 = vpow.pop %v938
    %v940 = vmul.f32 %v913, 1.442695
    %v941 = vpow.pop %v940
    %v942 = vmul.f32 %v914, 1.442695
    %v943 = vpow.pop %v942
    %v944 = vmul.f32 %v915, 1.442695
    %v945 = vpow.pop %v944
    %v946 = vmul.f32 %v916, 1.442695
    %v947 = vpow.pop %v946
    %v948 = vmul.f32 %v917, 1.442695
    %v949 = vpow.pop %v948
    %v950 = vld [vmem:[#allocation5] sm:$0xff]
    %v951 = vld [vmem:[#allocation5 + $0x8] sm:$0xff]
    %v952 = vld [vmem:[#allocation5 + $0x10] sm:$0xff]
    %v953 = vld [vmem:[#allocation5 + $0x18] sm:$0xff]
    %v954 = vld [vmem:[#allocation5 + $0x20] sm:$0xff]
    %v955 = vld [vmem:[#allocation5 + $0x28] sm:$0xff]
    %v956 = vld [vmem:[#allocation5 + $0x30] sm:$0xff]
    %v957 = vld [vmem:[#allocation5 + $0x38] sm:$0xff]
    %v958 = vld [vmem:[#allocation5 + $0x40] sm:$0xff]
    %v959 = vld [vmem:[#allocation5 + $0x48] sm:$0xff]
    %v960 = vld [vmem:[#allocation5 + $0x50] sm:$0xff]
    %v961 = vld [vmem:[#allocation5 + $0x58] sm:$0xff]
    %v962 = vld [vmem:[#allocation5 + $0x60] sm:$0xff]
    %v963 = vld [vmem:[#allocation5 + $0x68] sm:$0xff]
    %v964 = vld [vmem:[#allocation5 + $0x70] sm:$0xff]
    %v965 = vld [vmem:[#allocation5 + $0x78] sm:$0xff]
    %v966 = vmul.f32 %v791, %v950
    %v967 = vmul.f32 %v793, %v951
    %v968 = vmul.f32 %v795, %v952
    %v969 = vmul.f32 %v797, %v953
    %v970 = vmul.f32 %v799, %v954
    %v971 = vmul.f32 %v801, %v955
    %v972 = vmul.f32 %v803, %v956
    %v973 = vmul.f32 %v805, %v957
    %v974 = vmul.f32 %v807, %v958
    %v975 = vmul.f32 %v809, %v959
    %v976 = vmul.f32 %v811, %v960
    %v977 = vmul.f32 %v813, %v961
    %v978 = vmul.f32 %v815, %v962
    %v979 = vmul.f32 %v817, %v963
    %v980 = vmul.f32 %v819, %v964
    %v981 = vmul.f32 %v821, %v965
    %982 = vadd.xlane.f32.xlu0 %v919
    %v983 = vpop.xlane.xlu0 %982
    %984 = vadd.xlane.f32.xlu0 %v921
    %v985 = vpop.xlane.xlu0 %984
    %986 = vadd.xlane.f32.xlu0 %v923
    %v987 = vpop.xlane.xlu0 %986
    %988 = vadd.xlane.f32.xlu0 %v925
    %v989 = vpop.xlane.xlu0 %988
    %990 = vadd.xlane.f32.xlu0 %v927
    %v991 = vpop.xlane.xlu0 %990
    %992 = vadd.xlane.f32.xlu0 %v929
    %v993 = vpop.xlane.xlu0 %992
    %994 = vadd.xlane.f32.xlu0 %v931
    %v995 = vpop.xlane.xlu0 %994
    %996 = vadd.xlane.f32.xlu0 %v933
    %v997 = vpop.xlane.xlu0 %996
    %998 = vadd.xlane.f32.xlu0 %v935
    %v999 = vpop.xlane.xlu0 %998
    %1000 = vadd.xlane.f32.xlu0 %v937
    %v1001 = vpop.xlane.xlu0 %1000
    %1002 = vadd.xlane.f32.xlu0 %v939
    %v1003 = vpop.xlane.xlu0 %1002
    %1004 = vadd.xlane.f32.xlu0 %v941
    %v1005 = vpop.xlane.xlu0 %1004
    %1006 = vadd.xlane.f32.xlu0 %v943
    %v1007 = vpop.xlane.xlu0 %1006
    %1008 = vadd.xlane.f32.xlu0 %v945
    %v1009 = vpop.xlane.xlu0 %1008
    %1010 = vadd.xlane.f32.xlu0 %v947
    %v1011 = vpop.xlane.xlu0 %1010
    %1012 = vadd.xlane.f32.xlu0 %v949
    %v1013 = vpop.xlane.xlu0 %1012
    %v1014 = vadd.f32 %v966, %v983
    %v1015 = vadd.f32 %v967, %v985
    %v1016 = vadd.f32 %v968, %v987
    %v1017 = vadd.f32 %v969, %v989
    %v1018 = vadd.f32 %v970, %v991
    %v1019 = vadd.f32 %v971, %v993
    %v1020 = vadd.f32 %v972, %v995
    %v1021 = vadd.f32 %v973, %v997
    %v1022 = vadd.f32 %v974, %v999
    %v1023 = vadd.f32 %v975, %v1001
    %v1024 = vadd.f32 %v976, %v1003
    %v1025 = vadd.f32 %v977, %v1005
    %v1026 = vadd.f32 %v978, %v1007
    %v1027 = vadd.f32 %v979, %v1009
    %v1028 = vadd.f32 %v980, %v1011
    %v1029 = vadd.f32 %v981, %v1013
    %vm1030 = vcmask 7168
    %1031 = vst.msk [vmem:[#allocation5] sm:$0xff] %vm1030, %v1014
    %1032 = vst.msk [vmem:[#allocation5 + $0x8] sm:$0xff] %vm1030, %v1015
    %1033 = vst.msk [vmem:[#allocation5 + $0x10] sm:$0xff] %vm1030, %v1016
    %1034 = vst.msk [vmem:[#allocation5 + $0x18] sm:$0xff] %vm1030, %v1017
    %1035 = vst.msk [vmem:[#allocation5 + $0x20] sm:$0xff] %vm1030, %v1018
    %1036 = vst.msk [vmem:[#allocation5 + $0x28] sm:$0xff] %vm1030, %v1019
    %1037 = vst.msk [vmem:[#allocation5 + $0x30] sm:$0xff] %vm1030, %v1020
    %1038 = vst.msk [vmem:[#allocation5 + $0x38] sm:$0xff] %vm1030, %v1021
    %1039 = vst.msk [vmem:[#allocation5 + $0x40] sm:$0xff] %vm1030, %v1022
    %1040 = vst.msk [vmem:[#allocation5 + $0x48] sm:$0xff] %vm1030, %v1023
    %1041 = vst.msk [vmem:[#allocation5 + $0x50] sm:$0xff] %vm1030, %v1024
    %1042 = vst.msk [vmem:[#allocation5 + $0x58] sm:$0xff] %vm1030, %v1025
    %1043 = vst.msk [vmem:[#allocation5 + $0x60] sm:$0xff] %vm1030, %v1026
    %1044 = vst.msk [vmem:[#allocation5 + $0x68] sm:$0xff] %vm1030, %v1027
    %1045 = vst.msk [vmem:[#allocation5 + $0x70] sm:$0xff] %vm1030, %v1028
    %1046 = vst.msk [vmem:[#allocation5 + $0x78] sm:$0xff] %vm1030, %v1029
    %v1047 = vld [vmem:[#allocation3] sm:$0xff]
    %v1048 = vld [vmem:[#allocation3 + $0x8] sm:$0xff]
    %v1049 = vld [vmem:[#allocation3 + $0x10] sm:$0xff]
    %v1050 = vld [vmem:[#allocation3 + $0x18] sm:$0xff]
    %v1051 = vld [vmem:[#allocation3 + $0x20] sm:$0xff]
    %v1052 = vld [vmem:[#allocation3 + $0x28] sm:$0xff]
    %v1053 = vld [vmem:[#allocation3 + $0x30] sm:$0xff]
    %v1054 = vld [vmem:[#allocation3 + $0x38] sm:$0xff]
    %v1055 = vld [vmem:[#allocation3 + $0x40] sm:$0xff]
    %v1056 = vld [vmem:[#allocation3 + $0x48] sm:$0xff]
    %v1057 = vld [vmem:[#allocation3 + $0x50] sm:$0xff]
    %v1058 = vld [vmem:[#allocation3 + $0x58] sm:$0xff]
    %v1059 = vld [vmem:[#allocation3 + $0x60] sm:$0xff]
    %v1060 = vld [vmem:[#allocation3 + $0x68] sm:$0xff]
    %v1061 = vld [vmem:[#allocation3 + $0x70] sm:$0xff]
    %v1062 = vld [vmem:[#allocation3 + $0x78] sm:$0xff]
    %1064 = vset.pattern.permute.xlu0 0
    %1065 = vperm.xlu0 %1064, %v791
    %v1066 = vpop.permute.xlu0 %1065
    %1069 = vset.pattern.permute.xlu0 0
    %1070 = vperm.xlu0 %1069, %v793
    %v1071 = vpop.permute.xlu0 %1070
    %1074 = vset.pattern.permute.xlu0 0
    %1075 = vperm.xlu0 %1074, %v795
    %v1076 = vpop.permute.xlu0 %1075
    %1079 = vset.pattern.permute.xlu0 0
    %1080 = vperm.xlu0 %1079, %v797
    %v1081 = vpop.permute.xlu0 %1080
    %1084 = vset.pattern.permute.xlu0 0
    %1085 = vperm.xlu0 %1084, %v799
    %v1086 = vpop.permute.xlu0 %1085
    %1089 = vset.pattern.permute.xlu0 0
    %1090 = vperm.xlu0 %1089, %v801
    %v1091 = vpop.permute.xlu0 %1090
    %1094 = vset.pattern.permute.xlu0 0
    %1095 = vperm.xlu0 %1094, %v803
    %v1096 = vpop.permute.xlu0 %1095
    %1099 = vset.pattern.permute.xlu0 0
    %1100 = vperm.xlu0 %1099, %v805
    %v1101 = vpop.permute.xlu0 %1100
    %1104 = vset.pattern.permute.xlu0 0
    %1105 = vperm.xlu0 %1104, %v807
    %v1106 = vpop.permute.xlu0 %1105
    %1109 = vset.pattern.permute.xlu0 0
    %1110 = vperm.xlu0 %1109, %v809
    %v1111 = vpop.permute.xlu0 %1110
    %1114 = vset.pattern.permute.xlu0 0
    %1115 = vperm.xlu0 %1114, %v811
    %v1116 = vpop.permute.xlu0 %1115
    %1119 = vset.pattern.permute.xlu0 0
    %1120 = vperm.xlu0 %1119, %v813
    %v1121 = vpop.permute.xlu0 %1120
    %1124 = vset.pattern.permute.xlu0 0
    %1125 = vperm.xlu0 %1124, %v815
    %v1126 = vpop.permute.xlu0 %1125
    %1129 = vset.pattern.permute.xlu0 0
    %1130 = vperm.xlu0 %1129, %v817
    %v1131 = vpop.permute.xlu0 %1130
    %1134 = vset.pattern.permute.xlu0 0
    %1135 = vperm.xlu0 %1134, %v819
    %v1136 = vpop.permute.xlu0 %1135
    %1139 = vset.pattern.permute.xlu0 0
    %1140 = vperm.xlu0 %1139, %v821
    %v1141 = vpop.permute.xlu0 %1140
    %v1143 = vmul.f32 %v1066, %v1047
    %v1144 = vmul.f32 %v1071, %v1048
    %v1145 = vmul.f32 %v1076, %v1049
    %v1146 = vmul.f32 %v1081, %v1050
    %v1147 = vmul.f32 %v1086, %v1051
    %v1148 = vmul.f32 %v1091, %v1052
    %v1149 = vmul.f32 %v1096, %v1053
    %v1150 = vmul.f32 %v1101, %v1054
    %v1151 = vmul.f32 %v1106, %v1055
    %v1152 = vmul.f32 %v1111, %v1056
    %v1153 = vmul.f32 %v1116, %v1057
    %v1154 = vmul.f32 %v1121, %v1058
    %v1155 = vmul.f32 %v1126, %v1059
    %v1156 = vmul.f32 %v1131, %v1060
    %v1157 = vmul.f32 %v1136, %v1061
    %v1158 = vmul.f32 %v1141, %v1062
    %1159 = vmatprep.subr.mxu0 0.0
    %1160 = vmatpush1.msra.mxu0 %v525
    %1161 = vmatprep.subr.mxu0 0.0
    %1162 = vmatpush1.msra.mxu0 %v519
    %1163 = vmatprep.subr.mxu0 0.0
    %1164 = vmatpush1.msra.mxu0 %v513
    %1165 = vmatprep.subr.mxu0 0.0
    %1166 = vmatpush1.msra.mxu0 %v507
    %1167 = vmatprep.subr.mxu0 0.0
    %1168 = vmatpush1.msra.mxu0 %v501
    %1169 = vmatprep.subr.mxu0 0.0
    %1170 = vmatpush1.msra.mxu0 %v495
    %1171 = vmatprep.subr.mxu0 0.0
    %1172 = vmatpush1.msra.mxu0 %v489
    %1173 = vmatprep.subr.mxu0 0.0
    %1174 = vmatpush1.msra.mxu0 %v483
    %1175 = vmatprep.subr.mxu0 0.0
    %1176 = vmatpush1.msra.mxu0 %v477
    %1177 = vmatprep.subr.mxu0 0.0
    %1178 = vmatpush1.msra.mxu0 %v471
    %1179 = vmatprep.subr.mxu0 0.0
    %1180 = vmatpush1.msra.mxu0 %v465
    %1181 = vmatprep.subr.mxu0 0.0
    %1182 = vmatpush1.msra.mxu0 %v459
    %1183 = vmatprep.subr.mxu0 0.0
    %1184 = vmatpush1.msra.mxu0 %v453
    %1185 = vmatprep.subr.mxu0 0.0
    %1186 = vmatpush1.msra.mxu0 %v447
    %1187 = vmatprep.subr.mxu0 0.0
    %1188 = vmatpush1.msra.mxu0 %v441
    %1189 = vmatprep.subr.mxu0 0.0
    %1190 = vmatpush1.msra.mxu0 %v435
    %1191 = vmatprep.subr.mxu0 0.0
    %1192 = vmatpush2.msra.mxu0 0.0
    %1193 = vmatprep.subr.mxu0 0.0
    %1194 = vmatpush2.msra.mxu0 0.0
    %1195 = vmatprep.subr.mxu0 0.0
    %1196 = vmatpush2.msra.mxu0 0.0
    %1197 = vmatprep.subr.mxu0 0.0
    %1198 = vmatpush2.msra.mxu0 0.0
    %1199 = vmatprep.subr.mxu0 0.0
    %1200 = vmatpush2.msra.mxu0 0.0
    %1201 = vmatprep.subr.mxu0 0.0
    %1202 = vmatpush2.msra.mxu0 0.0
    %1203 = vmatprep.subr.mxu0 0.0
    %1204 = vmatpush2.msra.mxu0 0.0
    %1205 = vmatprep.subr.mxu0 0.0
    %1206 = vmatpush2.msra.mxu0 0.0
    %1207 = vmatprep.subr.mxu0 0.0
    %1208 = vmatpush2.msra.mxu0 0.0
    %1209 = vmatprep.subr.mxu0 0.0
    %1210 = vmatpush2.msra.mxu0 0.0
    %1211 = vmatprep.subr.mxu0 0.0
    %1212 = vmatpush2.msra.mxu0 0.0
    %1213 = vmatprep.subr.mxu0 0.0
    %1214 = vmatpush2.msra.mxu0 0.0
    %1215 = vmatprep.subr.mxu0 0.0
    %1216 = vmatpush2.msra.mxu0 0.0
    %1217 = vmatprep.subr.mxu0 0.0
    %1218 = vmatpush2.msra.mxu0 0.0
    %1219 = vmatprep.subr.mxu0 0.0
    %1220 = vmatpush2.msra.mxu0 0.0
    %1221 = vmatprep.subr.mxu0 0.0
    %1222 = vmatpush2.msra.mxu0 0.0
    %1223 = vmatprep.mubr.f32.mxu0 0.0
    %1224 = vmatmul.mubr.f32.gmra.mxu0 %v919
    %v1225 = vpop.f32.mrf.mxu0
    %v1226 = vadd.f32 0.0, %v1225
    %v1227 = vpop.f32.mrf.mxu0
    %1228 = vmatprep.mubr.f32.mxu0 0.0
    %1229 = vmatmul.mubr.f32.gmra.mxu0 %v921
    %v1230 = vpop.f32.mrf.mxu0
    %v1231 = vadd.f32 0.0, %v1230
    %v1232 = vpop.f32.mrf.mxu0
    %1233 = vmatprep.mubr.f32.mxu0 0.0
    %1234 = vmatmul.mubr.f32.gmra.mxu0 %v923
    %v1235 = vpop.f32.mrf.mxu0
    %v1236 = vadd.f32 0.0, %v1235
    %v1237 = vpop.f32.mrf.mxu0
    %1238 = vmatprep.mubr.f32.mxu0 0.0
    %1239 = vmatmul.mubr.f32.gmra.mxu0 %v925
    %v1240 = vpop.f32.mrf.mxu0
    %v1241 = vadd.f32 0.0, %v1240
    %v1242 = vpop.f32.mrf.mxu0
    %1243 = vmatprep.mubr.f32.mxu0 0.0
    %1244 = vmatmul.mubr.f32.gmra.mxu0 %v927
    %v1245 = vpop.f32.mrf.mxu0
    %v1246 = vadd.f32 0.0, %v1245
    %v1247 = vpop.f32.mrf.mxu0
    %1248 = vmatprep.mubr.f32.mxu0 0.0
    %1249 = vmatmul.mubr.f32.gmra.mxu0 %v929
    %v1250 = vpop.f32.mrf.mxu0
    %v1251 = vadd.f32 0.0, %v1250
    %v1252 = vpop.f32.mrf.mxu0
    %1253 = vmatprep.mubr.f32.mxu0 0.0
    %1254 = vmatmul.mubr.f32.gmra.mxu0 %v931
    %v1255 = vpop.f32.mrf.mxu0
    %v1256 = vadd.f32 0.0, %v1255
    %v1257 = vpop.f32.mrf.mxu0
    %1258 = vmatprep.mubr.f32.mxu0 0.0
    %1259 = vmatmul.mubr.f32.gmra.mxu0 %v933
    %v1260 = vpop.f32.mrf.mxu0
    %v1261 = vadd.f32 0.0, %v1260
    %v1262 = vpop.f32.mrf.mxu0
    %1263 = vmatprep.mubr.f32.mxu0 0.0
    %1264 = vmatmul.mubr.f32.gmra.mxu0 %v935
    %v1265 = vpop.f32.mrf.mxu0
    %v1266 = vadd.f32 0.0, %v1265
    %v1267 = vpop.f32.mrf.mxu0
    %1268 = vmatprep.mubr.f32.mxu0 0.0
    %1269 = vmatmul.mubr.f32.gmra.mxu0 %v937
    %v1270 = vpop.f32.mrf.mxu0
    %v1271 = vadd.f32 0.0, %v1270
    %v1272 = vpop.f32.mrf.mxu0
    %1273 = vmatprep.mubr.f32.mxu0 0.0
    %1274 = vmatmul.mubr.f32.gmra.mxu0 %v939
    %v1275 = vpop.f32.mrf.mxu0
    %v1276 = vadd.f32 0.0, %v1275
    %v1277 = vpop.f32.mrf.mxu0
    %1278 = vmatprep.mubr.f32.mxu0 0.0
    %1279 = vmatmul.mubr.f32.gmra.mxu0 %v941
    %v1280 = vpop.f32.mrf.mxu0
    %v1281 = vadd.f32 0.0, %v1280
    %v1282 = vpop.f32.mrf.mxu0
    %1283 = vmatprep.mubr.f32.mxu0 0.0
    %1284 = vmatmul.mubr.f32.gmra.mxu0 %v943
    %v1285 = vpop.f32.mrf.mxu0
    %v1286 = vadd.f32 0.0, %v1285
    %v1287 = vpop.f32.mrf.mxu0
    %1288 = vmatprep.mubr.f32.mxu0 0.0
    %1289 = vmatmul.mubr.f32.gmra.mxu0 %v945
    %v1290 = vpop.f32.mrf.mxu0
    %v1291 = vadd.f32 0.0, %v1290
    %v1292 = vpop.f32.mrf.mxu0
    %1293 = vmatprep.mubr.f32.mxu0 0.0
    %1294 = vmatmul.mubr.f32.gmra.mxu0 %v947
    %v1295 = vpop.f32.mrf.mxu0
    %v1296 = vadd.f32 0.0, %v1295
    %v1297 = vpop.f32.mrf.mxu0
    %1298 = vmatprep.mubr.f32.mxu0 0.0
    %1299 = vmatmul.mubr.f32.gmra.mxu0 %v949
    %v1300 = vpop.f32.mrf.mxu0
    %v1301 = vadd.f32 0.0, %v1300
    %v1302 = vpop.f32.mrf.mxu0
    %1303 = vdwg.mxu0
    %v1304 = vadd.f32 %v1143, %v1226
    %v1305 = vadd.f32 %v1144, %v1231
    %v1306 = vadd.f32 %v1145, %v1236
    %v1307 = vadd.f32 %v1146, %v1241
    %v1308 = vadd.f32 %v1147, %v1246
    %v1309 = vadd.f32 %v1148, %v1251
    %v1310 = vadd.f32 %v1149, %v1256
    %v1311 = vadd.f32 %v1150, %v1261
    %v1312 = vadd.f32 %v1151, %v1266
    %v1313 = vadd.f32 %v1152, %v1271
    %v1314 = vadd.f32 %v1153, %v1276
    %v1315 = vadd.f32 %v1154, %v1281
    %v1316 = vadd.f32 %v1155, %v1286
    %v1317 = vadd.f32 %v1156, %v1291
    %v1318 = vadd.f32 %v1157, %v1296
    %v1319 = vadd.f32 %v1158, %v1301
    %1320 = vst [vmem:[#allocation3] sm:$0xff] %v1304
    %1321 = vst [vmem:[#allocation3 + $0x8] sm:$0xff] %v1305
    %1322 = vst [vmem:[#allocation3 + $0x10] sm:$0xff] %v1306
    %1323 = vst [vmem:[#allocation3 + $0x18] sm:$0xff] %v1307
    %1324 = vst [vmem:[#allocation3 + $0x20] sm:$0xff] %v1308
    %1325 = vst [vmem:[#allocation3 + $0x28] sm:$0xff] %v1309
    %1326 = vst [vmem:[#allocation3 + $0x30] sm:$0xff] %v1310
    %1327 = vst [vmem:[#allocation3 + $0x38] sm:$0xff] %v1311
    %1328 = vst [vmem:[#allocation3 + $0x40] sm:$0xff] %v1312
    %1329 = vst [vmem:[#allocation3 + $0x48] sm:$0xff] %v1313
    %1330 = vst [vmem:[#allocation3 + $0x50] sm:$0xff] %v1314
    %1331 = vst [vmem:[#allocation3 + $0x58] sm:$0xff] %v1315
    %1332 = vst [vmem:[#allocation3 + $0x60] sm:$0xff] %v1316
    %1333 = vst [vmem:[#allocation3 + $0x68] sm:$0xff] %v1317
    %1334 = vst [vmem:[#allocation3 + $0x70] sm:$0xff] %v1318
    %1335 = vst [vmem:[#allocation3 + $0x78] sm:$0xff] %v1319
    %1336 = vst.msk [vmem:[#allocation4] sm:$0xff] %vm1030, %v758
    %1337 = vst.msk [vmem:[#allocation4 + $0x8] sm:$0xff] %vm1030, %v759
    %1338 = vst.msk [vmem:[#allocation4 + $0x10] sm:$0xff] %vm1030, %v760
    %1339 = vst.msk [vmem:[#allocation4 + $0x18] sm:$0xff] %vm1030, %v761
    %1340 = vst.msk [vmem:[#allocation4 + $0x20] sm:$0xff] %vm1030, %v762
    %1341 = vst.msk [vmem:[#allocation4 + $0x28] sm:$0xff] %vm1030, %v763
    %1342 = vst.msk [vmem:[#allocation4 + $0x30] sm:$0xff] %vm1030, %v764
    %1343 = vst.msk [vmem:[#allocation4 + $0x38] sm:$0xff] %vm1030, %v765
    %1344 = vst.msk [vmem:[#allocation4 + $0x40] sm:$0xff] %vm1030, %v766
    %1345 = vst.msk [vmem:[#allocation4 + $0x48] sm:$0xff] %vm1030, %v767
    %1346 = vst.msk [vmem:[#allocation4 + $0x50] sm:$0xff] %vm1030, %v768
    %1347 = vst.msk [vmem:[#allocation4 + $0x58] sm:$0xff] %vm1030, %v769
    %1348 = vst.msk [vmem:[#allocation4 + $0x60] sm:$0xff] %vm1030, %v770
    %1349 = vst.msk [vmem:[#allocation4 + $0x68] sm:$0xff] %vm1030, %v771
    %1350 = vst.msk [vmem:[#allocation4 + $0x70] sm:$0xff] %vm1030, %v772
    %1351 = vst.msk [vmem:[#allocation4 + $0x78] sm:$0xff] %vm1030, %v773
    // Predicated region
    $region30: #{tpu_custom_call.1} parent=1 // pred_check
      %p1352 = pneg %p56
    $region31: #{tpu_custom_call.1} parent=1 // pred_check_branch
      %1354 = sbr.rel (%p1352) target = $region33
    $region32: #{tpu_custom_call.1} parent=1 // pred_region
      %v1355 = vld [vmem:[#allocation5] sm:$0xff]
      %v1356 = vld [vmem:[#allocation5 + $0x8] sm:$0xff]
      %v1357 = vld [vmem:[#allocation5 + $0x10] sm:$0xff]
      %v1358 = vld [vmem:[#allocation5 + $0x18] sm:$0xff]
      %v1359 = vld [vmem:[#allocation5 + $0x20] sm:$0xff]
      %v1360 = vld [vmem:[#allocation5 + $0x28] sm:$0xff]
      %v1361 = vld [vmem:[#allocation5 + $0x30] sm:$0xff]
      %v1362 = vld [vmem:[#allocation5 + $0x38] sm:$0xff]
      %v1363 = vld [vmem:[#allocation5 + $0x40] sm:$0xff]
      %v1364 = vld [vmem:[#allocation5 + $0x48] sm:$0xff]
      %v1365 = vld [vmem:[#allocation5 + $0x50] sm:$0xff]
      %v1366 = vld [vmem:[#allocation5 + $0x58] sm:$0xff]
      %v1367 = vld [vmem:[#allocation5 + $0x60] sm:$0xff]
      %v1368 = vld [vmem:[#allocation5 + $0x68] sm:$0xff]
      %v1369 = vld [vmem:[#allocation5 + $0x70] sm:$0xff]
      %v1370 = vld [vmem:[#allocation5 + $0x78] sm:$0xff]
      %v1371 = vrcp.pop %v1355
      %v1372 = vrcp.pop %v1356
      %v1373 = vrcp.pop %v1357
      %v1374 = vrcp.pop %v1358
      %v1375 = vrcp.pop %v1359
      %v1376 = vrcp.pop %v1360
      %v1377 = vrcp.pop %v1361
      %v1378 = vrcp.pop %v1362
      %v1379 = vrcp.pop %v1363
      %v1380 = vrcp.pop %v1364
      %v1381 = vrcp.pop %v1365
      %v1382 = vrcp.pop %v1366
      %v1383 = vrcp.pop %v1367
      %v1384 = vrcp.pop %v1368
      %v1385 = vrcp.pop %v1369
      %v1386 = vrcp.pop %v1370
      %v1387 = vld [vmem:[#allocation3] sm:$0xff]
      %v1388 = vld [vmem:[#allocation3 + $0x8] sm:$0xff]
      %v1389 = vld [vmem:[#allocation3 + $0x10] sm:$0xff]
      %v1390 = vld [vmem:[#allocation3 + $0x18] sm:$0xff]
      %v1391 = vld [vmem:[#allocation3 + $0x20] sm:$0xff]
      %v1392 = vld [vmem:[#allocation3 + $0x28] sm:$0xff]
      %v1393 = vld [vmem:[#allocation3 + $0x30] sm:$0xff]
      %v1394 = vld [vmem:[#allocation3 + $0x38] sm:$0xff]
      %v1395 = vld [vmem:[#allocation3 + $0x40] sm:$0xff]
      %v1396 = vld [vmem:[#allocation3 + $0x48] sm:$0xff]
      %v1397 = vld [vmem:[#allocation3 + $0x50] sm:$0xff]
      %v1398 = vld [vmem:[#allocation3 + $0x58] sm:$0xff]
      %v1399 = vld [vmem:[#allocation3 + $0x60] sm:$0xff]
      %v1400 = vld [vmem:[#allocation3 + $0x68] sm:$0xff]
      %v1401 = vld [vmem:[#allocation3 + $0x70] sm:$0xff]
      %v1402 = vld [vmem:[#allocation3 + $0x78] sm:$0xff]
      %1404 = vset.pattern.permute.xlu0 0
      %1405 = vperm.xlu0 %1404, %v1371
      %v1406 = vpop.permute.xlu0 %1405
      %1409 = vset.pattern.permute.xlu0 0
      %1410 = vperm.xlu0 %1409, %v1372
      %v1411 = vpop.permute.xlu0 %1410
      %1414 = vset.pattern.permute.xlu0 0
      %1415 = vperm.xlu0 %1414, %v1373
      %v1416 = vpop.permute.xlu0 %1415
      %1419 = vset.pattern.permute.xlu0 0
      %1420 = vperm.xlu0 %1419, %v1374
      %v1421 = vpop.permute.xlu0 %1420
      %1424 = vset.pattern.permute.xlu0 0
      %1425 = vperm.xlu0 %1424, %v1375
      %v1426 = vpop.permute.xlu0 %1425
      %1429 = vset.pattern.permute.xlu0 0
      %1430 = vperm.xlu0 %1429, %v1376
      %v1431 = vpop.permute.xlu0 %1430
      %1434 = vset.pattern.permute.xlu0 0
      %1435 = vperm.xlu0 %1434, %v1377
      %v1436 = vpop.permute.xlu0 %1435
      %1439 = vset.pattern.permute.xlu0 0
      %1440 = vperm.xlu0 %1439, %v1378
      %v1441 = vpop.permute.xlu0 %1440
      %1444 = vset.pattern.permute.xlu0 0
      %1445 = vperm.xlu0 %1444, %v1379
      %v1446 = vpop.permute.xlu0 %1445
      %1449 = vset.pattern.permute.xlu0 0
      %1450 = vperm.xlu0 %1449, %v1380
      %v1451 = vpop.permute.xlu0 %1450
      %1454 = vset.pattern.permute.xlu0 0
      %1455 = vperm.xlu0 %1454, %v1381
      %v1456 = vpop.permute.xlu0 %1455
      %1459 = vset.pattern.permute.xlu0 0
      %1460 = vperm.xlu0 %1459, %v1382
      %v1461 = vpop.permute.xlu0 %1460
      %1464 = vset.pattern.permute.xlu0 0
      %1465 = vperm.xlu0 %1464, %v1383
      %v1466 = vpop.permute.xlu0 %1465
      %1469 = vset.pattern.permute.xlu0 0
      %1470 = vperm.xlu0 %1469, %v1384
      %v1471 = vpop.permute.xlu0 %1470
      %1474 = vset.pattern.permute.xlu0 0
      %1475 = vperm.xlu0 %1474, %v1385
      %v1476 = vpop.permute.xlu0 %1475
      %1479 = vset.pattern.permute.xlu0 0
      %1480 = vperm.xlu0 %1479, %v1386
      %v1481 = vpop.permute.xlu0 %1480
      %v1483 = vmul.f32 %v1387, %v1406
      %v1484 = vmul.f32 %v1388, %v1411
      %v1485 = vmul.f32 %v1389, %v1416
      %v1486 = vmul.f32 %v1390, %v1421
      %v1487 = vmul.f32 %v1391, %v1426
      %v1488 = vmul.f32 %v1392, %v1431
      %v1489 = vmul.f32 %v1393, %v1436
      %v1490 = vmul.f32 %v1394, %v1441
      %v1491 = vmul.f32 %v1395, %v1446
      %v1492 = vmul.f32 %v1396, %v1451
      %v1493 = vmul.f32 %v1397, %v1456
      %v1494 = vmul.f32 %v1398, %v1461
      %v1495 = vmul.f32 %v1399, %v1466
      %v1496 = vmul.f32 %v1400, %v1471
      %v1497 = vmul.f32 %v1401, %v1476
      %v1498 = vmul.f32 %v1402, %v1481
      %1499 = vst [vmem:[#allocation12] sm:$0xff] %v1483
      %1500 = vst [vmem:[#allocation12 + $0x8] sm:$0xff] %v1484
      %1501 = vst [vmem:[#allocation12 + $0x10] sm:$0xff] %v1485
      %1502 = vst [vmem:[#allocation12 + $0x18] sm:$0xff] %v1486
      %1503 = vst [vmem:[#allocation12 + $0x20] sm:$0xff] %v1487
      %1504 = vst [vmem:[#allocation12 + $0x28] sm:$0xff] %v1488
      %1505 = vst [vmem:[#allocation12 + $0x30] sm:$0xff] %v1489
      %1506 = vst [vmem:[#allocation12 + $0x38] sm:$0xff] %v1490
      %1507 = vst [vmem:[#allocation12 + $0x40] sm:$0xff] %v1491
      %1508 = vst [vmem:[#allocation12 + $0x48] sm:$0xff] %v1492
      %1509 = vst [vmem:[#allocation12 + $0x50] sm:$0xff] %v1493
      %1510 = vst [vmem:[#allocation12 + $0x58] sm:$0xff] %v1494
      %1511 = vst [vmem:[#allocation12 + $0x60] sm:$0xff] %v1495
      %1512 = vst [vmem:[#allocation12 + $0x68] sm:$0xff] %v1496
      %1513 = vst [vmem:[#allocation12 + $0x70] sm:$0xff] %v1497
      %1514 = vst [vmem:[#allocation12 + $0x78] sm:$0xff] %v1498
    $region33: #{tpu_custom_call.1} parent=1 // pred_fallthru
      _
    // Predicated region
    $region34: #{tpu_custom_call.1} parent=1 // pred_check
      _
    $region35: #{tpu_custom_call.1} parent=1 // pred_check_branch
      %1516 = sbr.rel (0) target = $region37
    $region36: #{tpu_custom_call.1} parent=1 // pred_region
      %s1518 = ssub.s32 2048, 2048
      %1519 = vsyncadd [#allocation8], %s1518
      %s1520 = sshll.u32 [#allocation12], 4
      %s1521 = int_to_ptr.vmem [resolvable:$true] %s1520
      %1526 = dma.vmem_to_hbm [thread:$0]  %s1521, 2048, %s3, [#allocation8], 128, 128, 8
    $region37: #{tpu_custom_call.1} parent=1 // pred_fallthru
      _
    // Predicated region
    $region38: #{tpu_custom_call.1} parent=1 // pred_check
      _
    $region39: #{tpu_custom_call.1} parent=1 // pred_check_branch
      %1528 = sbr.rel (0) target = $region41
    $region40: #{tpu_custom_call.1} parent=1 // pred_region
      %1529 = dma.done [#allocation8], 2048
    $region41: #{tpu_custom_call.1} parent=1 // pred_fallthru
      _
    %1530 = vsyncpa [#allocation7], 1
    %1531 = vsyncpa [#allocation10], 1
    %1532 = vsyncpa [#allocation8], 1

</llo_original>
